<compile_context>
chip_gen: v6e
topology: v6e:2x2x1
jax: 0.10.0
libtpu: 0.0.40
codegen_flags: <defaults>
</compile_context>

<pallas_src>
import jax
import jax.numpy as jnp
from jax.experimental import pallas as pl
from jax.experimental.pallas import tpu as pltpu

EPS = 1e-8  # matches torch.nn.functional.cosine_similarity default eps


def _cdiv(a: int, b: int) -> int:
    return -(-a // b)


def _round_up(x: int, m: int) -> int:
    return ((x + m - 1) // m) * m


def _make_kernel(n: int, tile: int, tiles_per_chunk: int):
    """Build the fused-views TBGRL kernel (n, tile, tiles_per_chunk are static)."""

    def kernel(e1_ref, e2_ref, y2_ref, y1_ref, yn_ref,
               w1_ref, b1_ref, w2_ref, b2_ref,
               pos_ref, neg_ref, acc_pos, acc_neg):
        c = pl.program_id(0)          # node chunk (megacore "parallel" axis)
        i = pl.program_id(1)          # node tile within chunk ("arbitrary")

        @pl.when(i == 0)
        def _init():
            acc_pos[...] = jnp.zeros_like(acc_pos)
            acc_neg[...] = jnp.zeros_like(acc_neg)

        # Ragged-tail row mask from the *logical* (unclamped) global tile index.
        g = c * tiles_per_chunk + i
        row = g * tile + jax.lax.broadcasted_iota(jnp.int32, (tile, 1), 0)
        mask = row < n                                            # (tile, 1)

        def head(x_ref):
            # MXU matmuls in the embeddings' native dtype; f32 accumulation.
            x = x_ref[...]
            h = jnp.dot(x, w1_ref[...], preferred_element_type=jnp.float32)
            h = jnp.maximum(h + b1_ref[...], 0.0)                 # ReLU, f32
            q = jnp.dot(h.astype(w2_ref.dtype), w2_ref[...],
                        preferred_element_type=jnp.float32)
            return q + b2_ref[...]

        q1 = head(e1_ref)                                         # (tile, D) f32
        q2 = head(e2_ref)

        y2 = y2_ref[...].astype(jnp.float32)
        y1 = y1_ref[...].astype(jnp.float32)
        yn = yn_ref[...].astype(jnp.float32)

        def inv_norm(a):
            # min(rsqrt(s), 1/eps) == 1 / max(sqrt(s), eps)   (EUP rsqrt slot)
            return jnp.minimum(
                jax.lax.rsqrt(jnp.sum(a * a, axis=-1, keepdims=True)),
                1.0 / EPS)

        inv_q1, inv_q2 = inv_norm(q1), inv_norm(q2)
        inv_y1, inv_y2, inv_yn = inv_norm(y1), inv_norm(y2), inv_norm(yn)

        def cos(a, inv_a, b, inv_b):
            return jnp.sum(a * b, axis=-1, keepdims=True) * inv_a * inv_b

        pos_c = cos(q1, inv_q1, y2, inv_y2) + cos(q2, inv_q2, y1, inv_y1)
        pos_c = jnp.where(mask, pos_c, 0.0)   # select: tail garbage can't leak NaN
        neg_c = cos(q1, inv_q1, yn, inv_yn) + cos(q2, inv_q2, yn, inv_yn)
        neg_c = jnp.where(mask, neg_c, 0.0)

        # Vector accumulators: pure VPU add per step, no per-step scalar reduce.
        acc_pos[...] = acc_pos[...] + pos_c
        acc_neg[...] = acc_neg[...] + neg_c

        @pl.when(i == pl.num_programs(1) - 1)
        def _finalize():
            # Single cross-sublane reduce + lane-dense (8, 128) store per chunk.
            pos_ref[...] = jnp.zeros_like(pos_ref) + jnp.sum(acc_pos[...])
            neg_ref[...] = jnp.zeros_like(neg_ref) + jnp.sum(acc_neg[...])

    return kernel


def tbgrl_forward(enc1, enc2, y1, y2, neg_y, params,
                  *, neg_lambda: float = 0.12, tile_n: int = 4096):
    """TBGRL head + triplet loss.  Returns (loss_scalar, num_root_nodes)."""
    w1, b1, w2, b2 = params
    n, out_dim = enc1.shape
    hid_dim = w1.shape[1]

    emb_dtype = enc1.dtype
    # Resident head params: weights in the embedding dtype (bf16 MXU fast path
    # when embeddings are bf16), biases in f32 (added to the f32 accumulators).
    w1_k = w1.astype(emb_dtype)
    w2_k = w2.astype(emb_dtype)
    b1_k = jnp.asarray(b1, jnp.float32).reshape(1, hid_dim)
    b2_k = jnp.asarray(b2, jnp.float32).reshape(1, out_dim)

    # Node tiling: rows padded only to the 8-sublane granule; feature dim is
    # streamed at its true width (block last dim == full array dim).
    tile = max(8, _round_up(min(tile_n, n), 8))
    n_tiles = _cdiv(n, tile)
    num_chunks = 2 if n_tiles >= 2 else 1      # leading "parallel" chunk axis
    tiles_per_chunk = _cdiv(n_tiles, num_chunks)
    max_blk = n_tiles - 1

    def emb_map(c, i):
        # Clamp so a padded final tile of chunk 1 re-reads a valid block
        # (its rows are fully masked in-kernel, so correctness is unaffected).
        return (jnp.minimum(c * tiles_per_chunk + i, max_blk), 0)

    def const_map(c, i):
        return (0, 0)

    kernel = _make_kernel(n=n, tile=tile, tiles_per_chunk=tiles_per_chunk)
    emb_spec = pl.BlockSpec((tile, out_dim), emb_map)

    itemsize = jnp.dtype(emb_dtype).itemsize
    cost = pl.CostEstimate(
        flops=int(n * (8 * out_dim * hid_dim + 40 * out_dim)),
        transcendentals=int(5 * n),
        bytes_accessed=int(5 * n * out_dim * itemsize
                           + 2 * out_dim * hid_dim * itemsize
                           + num_chunks * 2 * 8 * 128 * 4),
    )

    pos_p, neg_p = pl.pallas_call(
        kernel,
        out_shape=(jax.ShapeDtypeStruct((num_chunks * 8, 128), jnp.float32),
                   jax.ShapeDtypeStruct((num_chunks * 8, 128), jnp.float32)),
        grid=(num_chunks, tiles_per_chunk),
        in_specs=[
            emb_spec,                                      # enc1
            emb_spec,                                      # enc2
            emb_spec,                                      # y2  (pairs with q1)
            emb_spec,                                      # y1  (pairs with q2)
            emb_spec,                                      # neg_y (streamed once)
            pl.BlockSpec((out_dim, hid_dim), const_map),   # W1 (resident)
            pl.BlockSpec((1, hid_dim), const_map),         # b1
            pl.BlockSpec((hid_dim, out_dim), const_map),   # W2
            pl.BlockSpec((1, out_dim), const_map),         # b2
        ],
        out_specs=(pl.BlockSpec((8, 128), lambda c, i: (c, 0)),
                   pl.BlockSpec((8, 128), lambda c, i: (c, 0))),
        scratch_shapes=[pltpu.VMEM((tile, 1), jnp.float32),   # acc_pos
                        pltpu.VMEM((tile, 1), jnp.float32)],  # acc_neg
        compiler_params=pltpu.CompilerParams(
            dimension_semantics=("parallel", "arbitrary")),
        cost_estimate=cost,
    )(enc1, enc2, y2, y1, neg_y, w1_k, b1_k, w2_k, b2_k)

    pos_sum = jnp.sum(pos_p.reshape(num_chunks, 8, 128)[:, 0, 0])
    neg_sum = jnp.sum(neg_p.reshape(num_chunks, 8, 128)[:, 0, 0])

    inv_n = 1.0 / float(n)                     # divide by the TRUE node count
    pos_loss = 2.0 - pos_sum * inv_n
    neg_loss = neg_sum * inv_n
    loss = neg_lambda * neg_loss + (1.0 - neg_lambda) * pos_loss
    return loss, n


def init_head_params(key, out_dim, hid_dim, dtype=jnp.float32):
    """Deterministic init mimicking torch.nn.Linear (uniform +/- 1/sqrt(fan_in))."""
    k1, k2, k3, k4 = jax.random.split(key, 4)
    lim1 = 1.0 / jnp.sqrt(out_dim)
    lim2 = 1.0 / jnp.sqrt(hid_dim)
    w1 = jax.random.uniform(k1, (out_dim, hid_dim), dtype, -lim1, lim1)
    b1 = jax.random.uniform(k2, (1, hid_dim), dtype, -lim1, lim1)
    w2 = jax.random.uniform(k3, (hid_dim, out_dim), dtype, -lim2, lim2)
    b2 = jax.random.uniform(k4, (1, out_dim), dtype, -lim2, lim2)
    return w1, b1, w2, b2


if __name__ == "__main__":
    # Small, module-consistent shapes: 200 root nodes, out_dim=32, hid_dim=64.
    # tile_n=64 -> grid (2 chunks, 2 tiles) with a ragged (8-row) final tile,
    # exercising the chunk split, the resident accumulators and the row mask.
    N, OUT_DIM, HID_DIM = 200, 32, 64
    NEG_LAMBDA = 0.12

    key = jax.random.PRNGKey(0)
    k1, k2, k3, k4, k5, kp = jax.random.split(key, 6)
    enc1 = jax.random.normal(k1, (N, OUT_DIM), jnp.float32)
    enc2 = jax.random.normal(k2, (N, OUT_DIM), jnp.float32)
    y1 = jax.random.normal(k3, (N, OUT_DIM), jnp.float32)
    y2 = jax.random.normal(k4, (N, OUT_DIM), jnp.float32)
    neg_y = jax.random.normal(k5, (N, OUT_DIM), jnp.float32)
    params = init_head_params(kp, OUT_DIM, HID_DIM)

    loss, n_nodes = tbgrl_forward(enc1, enc2, y1, y2, neg_y, params,
                                  neg_lambda=NEG_LAMBDA, tile_n=64)
    loss = jax.block_until_ready(loss)

    # Pure-JAX reference (same math, no Pallas).
    hp = jax.lax.Precision.HIGHEST

    def ref_head(x, w1, b1, w2, b2):
        h = jnp.maximum(jnp.dot(x, w1, precision=hp) + b1, 0.0)
        return jnp.dot(h, w2, precision=hp) + b2

    def ref_mean_cos(a, b):
        num = jnp.sum(a * b, axis=-1)
        an = jnp.maximum(jnp.sqrt(jnp.sum(a * a, axis=-1)), EPS)
        bn = jnp.maximum(jnp.sqrt(jnp.sum(b * b, axis=-1)), EPS)
        return jnp.mean(num / (an * bn))

    q1_ref = ref_head(enc1, *params)
    q2_ref = ref_head(enc2, *params)
    pos_ref = 2.0 - ref_mean_cos(q1_ref, y2) - ref_mean_cos(q2_ref, y1)
    neg_ref = ref_mean_cos(q1_ref, neg_y) + ref_mean_cos(q2_ref, neg_y)
    loss_ref = NEG_LAMBDA * neg_ref + (1.0 - NEG_LAMBDA) * pos_ref

    assert n_nodes == N
    assert jnp.allclose(loss, loss_ref, atol=5e-3, rtol=1e-3), (loss, loss_ref)

    print("KERNEL_OK")
</pallas_src>

<mosaic_0001>
module attributes {stable_mosaic.version = 11 : i64} {
  func.func @kernel(%arg0: i32, %arg1: i32, %arg2: memref<64x32xf32, #tpu.memory_space<vmem>>, %arg3: memref<64x32xf32, #tpu.memory_space<vmem>>, %arg4: memref<64x32xf32, #tpu.memory_space<vmem>>, %arg5: memref<64x32xf32, #tpu.memory_space<vmem>>, %arg6: memref<64x32xf32, #tpu.memory_space<vmem>>, %arg7: memref<32x64xf32, #tpu.memory_space<vmem>>, %arg8: memref<1x64xf32, #tpu.memory_space<vmem>>, %arg9: memref<64x32xf32, #tpu.memory_space<vmem>>, %arg10: memref<1x32xf32, #tpu.memory_space<vmem>>, %arg11: memref<8x128xf32, #tpu.memory_space<vmem>>, %arg12: memref<8x128xf32, #tpu.memory_space<vmem>>, %arg13: memref<64x1xf32, #tpu.memory_space<vmem>>, %arg14: memref<64x1xf32, #tpu.memory_space<vmem>>) attributes {dimension_semantics = [#tpu.dimension_semantics<parallel>, #tpu.dimension_semantics<arbitrary>], iteration_bounds = array<i64: 2, 2>, scalar_prefetch = 0 : i64, scratch_operands = 2 : i64, tpu.core_type = #tpu.core_type<tc>, window_params = [{transform_indices = @transform_0, window_bounds = array<i64: 64, 32>}, {transform_indices = @transform_1, window_bounds = array<i64: 64, 32>}, {transform_indices = @transform_2, window_bounds = array<i64: 64, 32>}, {transform_indices = @transform_3, window_bounds = array<i64: 64, 32>}, {transform_indices = @transform_4, window_bounds = array<i64: 64, 32>}, {pipeline_mode = #tpu.pipeline_mode<synchronous>, transform_indices = @transform_5, window_bounds = array<i64: 32, 64>}, {pipeline_mode = #tpu.pipeline_mode<synchronous>, transform_indices = @transform_6, window_bounds = array<i64: 1, 64>}, {pipeline_mode = #tpu.pipeline_mode<synchronous>, transform_indices = @transform_7, window_bounds = array<i64: 64, 32>}, {pipeline_mode = #tpu.pipeline_mode<synchronous>, transform_indices = @transform_8, window_bounds = array<i64: 1, 32>}, {transform_indices = @transform_9, window_bounds = array<i64: 8, 128>}, {transform_indices = @transform_10, window_bounds = array<i64: 8, 128>}]} {
    %c0_i32 = arith.constant 0 : i32
    %0 = arith.cmpi eq, %arg1, %c0_i32 : i32
    %1 = arith.extui %0 : i1 to i32
    %c0_i32_0 = arith.constant 0 : i32
    %2 = arith.cmpi ne, %1, %c0_i32_0 : i32
    scf.if %2 {
      %cst_56 = arith.constant 0.000000e+00 : f32
      %105 = vector.broadcast %cst_56 : f32 to vector<64x1xf32>
      %c0_57 = arith.constant 0 : index
      %c0_58 = arith.constant 0 : index
      %106 = vector.load %arg13[%c0_57, %c0_58] : memref<64x1xf32, #tpu.memory_space<vmem>>, vector<64x1xf32>
      tpu.vector_store %arg13[%c0_57, %c0_58], %105 {strides = array<i32>} : memref<64x1xf32, #tpu.memory_space<vmem>>, vector<64x1xf32>,
      %cst_59 = arith.constant 0.000000e+00 : f32
      %107 = vector.broadcast %cst_59 : f32 to vector<64x1xf32>
      %c0_60 = arith.constant 0 : index
      %c0_61 = arith.constant 0 : index
      %108 = vector.load %arg14[%c0_60, %c0_61] : memref<64x1xf32, #tpu.memory_space<vmem>>, vector<64x1xf32>
      tpu.vector_store %arg14[%c0_60, %c0_61], %107 {strides = array<i32>} : memref<64x1xf32, #tpu.memory_space<vmem>>, vector<64x1xf32>,
    } else {
    }
    %c2_i32 = arith.constant 2 : i32
    %3 = arith.muli %arg0, %c2_i32 : i32
    %4 = arith.addi %3, %arg1 : i32
    %c64_i32 = arith.constant 64 : i32
    %5 = arith.muli %4, %c64_i32 : i32
    %6 = tpu.iota {dimensions = array<i32: 0>} : vector<64x1xi32>
    %7 = vector.broadcast %5 : i32 to vector<64x1xi32>
    %8 = arith.addi %7, %6 : vector<64x1xi32>
    %c200_i32 = arith.constant 200 : i32
    %9 = vector.broadcast %c200_i32 : i32 to vector<64x1xi32>
    %10 = arith.cmpi slt, %8, %9 : vector<64x1xi32>
    %c0 = arith.constant 0 : index
    %c0_1 = arith.constant 0 : index
    %11 = vector.load %arg2[%c0, %c0_1] : memref<64x32xf32, #tpu.memory_space<vmem>>, vector<64x32xf32>
    %c0_2 = arith.constant 0 : index
    %c0_3 = arith.constant 0 : index
    %12 = vector.load %arg7[%c0_2, %c0_3] : memref<32x64xf32, #tpu.memory_space<vmem>>, vector<32x64xf32>
    %cst = arith.constant dense<0.000000e+00> : vector<64x64xf32>
    %13 = tpu.matmul %11, %12, %cst {dimension_numbers = #tpu.dot_dimension_numbers<[1], [0], [0], [1], [0, 0, 1, 1], [], []>} : vector<64x32xf32>, vector<32x64xf32>, vector<64x64xf32> -> vector<64x64xf32>
    %c0_4 = arith.constant 0 : index
    %c0_5 = arith.constant 0 : index
    %14 = vector.load %arg8[%c0_4, %c0_5] : memref<1x64xf32, #tpu.memory_space<vmem>>, vector<1x64xf32>
    %15 = vector.broadcast %14 : vector<1x64xf32> to vector<64x64xf32>
    %16 = arith.addf %13, %15 : vector<64x64xf32>
    %cst_6 = arith.constant 0.000000e+00 : f32
    %17 = vector.broadcast %cst_6 : f32 to vector<64x64xf32>
    %18 = arith.maximumf %16, %17 : vector<64x64xf32>
    %c0_7 = arith.constant 0 : index
    %c0_8 = arith.constant 0 : index
    %19 = vector.load %arg9[%c0_7, %c0_8] : memref<64x32xf32, #tpu.memory_space<vmem>>, vector<64x32xf32>
    %cst_9 = arith.constant dense<0.000000e+00> : vector<64x32xf32>
    %20 = tpu.matmul %18, %19, %cst_9 {dimension_numbers = #tpu.dot_dimension_numbers<[1], [0], [0], [1], [0, 0, 1, 1], [], []>} : vector<64x64xf32>, vector<64x32xf32>, vector<64x32xf32> -> vector<64x32xf32>
    %c0_10 = arith.constant 0 : index
    %c0_11 = arith.constant 0 : index
    %21 = vector.load %arg10[%c0_10, %c0_11] : memref<1x32xf32, #tpu.memory_space<vmem>>, vector<1x32xf32>
    %22 = vector.broadcast %21 : vector<1x32xf32> to vector<64x32xf32>
    %23 = arith.addf %20, %22 : vector<64x32xf32>
    %c0_12 = arith.constant 0 : index
    %c0_13 = arith.constant 0 : index
    %24 = vector.load %arg3[%c0_12, %c0_13] : memref<64x32xf32, #tpu.memory_space<vmem>>, vector<64x32xf32>
    %c0_14 = arith.constant 0 : index
    %c0_15 = arith.constant 0 : index
    %25 = vector.load %arg7[%c0_14, %c0_15] : memref<32x64xf32, #tpu.memory_space<vmem>>, vector<32x64xf32>
    %cst_16 = arith.constant dense<0.000000e+00> : vector<64x64xf32>
    %26 = tpu.matmul %24, %25, %cst_16 {dimension_numbers = #tpu.dot_dimension_numbers<[1], [0], [0], [1], [0, 0, 1, 1], [], []>} : vector<64x32xf32>, vector<32x64xf32>, vector<64x64xf32> -> vector<64x64xf32>
    %c0_17 = arith.constant 0 : index
    %c0_18 = arith.constant 0 : index
    %27 = vector.load %arg8[%c0_17, %c0_18] : memref<1x64xf32, #tpu.memory_space<vmem>>, vector<1x64xf32>
    %28 = vector.broadcast %27 : vector<1x64xf32> to vector<64x64xf32>
    %29 = arith.addf %26, %28 : vector<64x64xf32>
    %cst_19 = arith.constant 0.000000e+00 : f32
    %30 = vector.broadcast %cst_19 : f32 to vector<64x64xf32>
    %31 = arith.maximumf %29, %30 : vector<64x64xf32>
    %c0_20 = arith.constant 0 : index
    %c0_21 = arith.constant 0 : index
    %32 = vector.load %arg9[%c0_20, %c0_21] : memref<64x32xf32, #tpu.memory_space<vmem>>, vector<64x32xf32>
    %cst_22 = arith.constant dense<0.000000e+00> : vector<64x32xf32>
    %33 = tpu.matmul %31, %32, %cst_22 {dimension_numbers = #tpu.dot_dimension_numbers<[1], [0], [0], [1], [0, 0, 1, 1], [], []>} : vector<64x64xf32>, vector<64x32xf32>, vector<64x32xf32> -> vector<64x32xf32>
    %c0_23 = arith.constant 0 : index
    %c0_24 = arith.constant 0 : index
    %34 = vector.load %arg10[%c0_23, %c0_24] : memref<1x32xf32, #tpu.memory_space<vmem>>, vector<1x32xf32>
    %35 = vector.broadcast %34 : vector<1x32xf32> to vector<64x32xf32>
    %36 = arith.addf %33, %35 : vector<64x32xf32>
    %c0_25 = arith.constant 0 : index
    %c0_26 = arith.constant 0 : index
    %37 = vector.load %arg4[%c0_25, %c0_26] : memref<64x32xf32, #tpu.memory_space<vmem>>, vector<64x32xf32>
    %c0_27 = arith.constant 0 : index
    %c0_28 = arith.constant 0 : index
    %38 = vector.load %arg5[%c0_27, %c0_28] : memref<64x32xf32, #tpu.memory_space<vmem>>, vector<64x32xf32>
    %c0_29 = arith.constant 0 : index
    %c0_30 = arith.constant 0 : index
    %39 = vector.load %arg6[%c0_29, %c0_30] : memref<64x32xf32, #tpu.memory_space<vmem>>, vector<64x32xf32>
    %40 = arith.mulf %23, %23 : vector<64x32xf32>
    %cst_31 = arith.constant dense<0.000000e+00> : vector<64xf32>
    %41 = vector.multi_reduction <add>, %40, %cst_31 [1] : vector<64x32xf32> to vector<64xf32>
    %42 = vector.shape_cast %41 : vector<64xf32> to vector<64x1xf32>
    %43 = math.rsqrt %42 : vector<64x1xf32>
    %cst_32 = arith.constant 1.000000e+08 : f32
    %44 = vector.broadcast %cst_32 : f32 to vector<64x1xf32>
    %45 = arith.minimumf %43, %44 : vector<64x1xf32>
    %46 = arith.mulf %36, %36 : vector<64x32xf32>
    %cst_33 = arith.constant dense<0.000000e+00> : vector<64xf32>
    %47 = vector.multi_reduction <add>, %46, %cst_33 [1] : vector<64x32xf32> to vector<64xf32>
    %48 = vector.shape_cast %47 : vector<64xf32> to vector<64x1xf32>
    %49 = math.rsqrt %48 : vector<64x1xf32>
    %cst_34 = arith.constant 1.000000e+08 : f32
    %50 = vector.broadcast %cst_34 : f32 to vector<64x1xf32>
    %51 = arith.minimumf %49, %50 : vector<64x1xf32>
    %52 = arith.mulf %38, %38 : vector<64x32xf32>
    %cst_35 = arith.constant dense<0.000000e+00> : vector<64xf32>
    %53 = vector.multi_reduction <add>, %52, %cst_35 [1] : vector<64x32xf32> to vector<64xf32>
    %54 = vector.shape_cast %53 : vector<64xf32> to vector<64x1xf32>
    %55 = math.rsqrt %54 : vector<64x1xf32>
    %cst_36 = arith.constant 1.000000e+08 : f32
    %56 = vector.broadcast %cst_36 : f32 to vector<64x1xf32>
    %57 = arith.minimumf %55, %56 : vector<64x1xf32>
    %58 = arith.mulf %37, %37 : vector<64x32xf32>
    %cst_37 = arith.constant dense<0.000000e+00> : vector<64xf32>
    %59 = vector.multi_reduction <add>, %58, %cst_37 [1] : vector<64x32xf32> to vector<64xf32>
    %60 = vector.shape_cast %59 : vector<64xf32> to vector<64x1xf32>
    %61 = math.rsqrt %60 : vector<64x1xf32>
    %cst_38 = arith.constant 1.000000e+08 : f32
    %62 = vector.broadcast %cst_38 : f32 to vector<64x1xf32>
    %63 = arith.minimumf %61, %62 : vector<64x1xf32>
    %64 = arith.mulf %39, %39 : vector<64x32xf32>
    %cst_39 = arith.constant dense<0.000000e+00> : vector<64xf32>
    %65 = vector.multi_reduction <add>, %64, %cst_39 [1] : vector<64x32xf32> to vector<64xf32>
    %66 = vector.shape_cast %65 : vector<64xf32> to vector<64x1xf32>
    %67 = math.rsqrt %66 : vector<64x1xf32>
    %cst_40 = arith.constant 1.000000e+08 : f32
    %68 = vector.broadcast %cst_40 : f32 to vector<64x1xf32>
    %69 = arith.minimumf %67, %68 : vector<64x1xf32>
    %70 = arith.mulf %23, %37 : vector<64x32xf32>
    %cst_41 = arith.constant dense<0.000000e+00> : vector<64xf32>
    %71 = vector.multi_reduction <add>, %70, %cst_41 [1] : vector<64x32xf32> to vector<64xf32>
    %72 = vector.shape_cast %71 : vector<64xf32> to vector<64x1xf32>
    %73 = arith.mulf %72, %45 : vector<64x1xf32>
    %74 = arith.mulf %73, %63 : vector<64x1xf32>
    %75 = arith.mulf %36, %38 : vector<64x32xf32>
    %cst_42 = arith.constant dense<0.000000e+00> : vector<64xf32>
    %76 = vector.multi_reduction <add>, %75, %cst_42 [1] : vector<64x32xf32> to vector<64xf32>
    %77 = vector.shape_cast %76 : vector<64xf32> to vector<64x1xf32>
    %78 = arith.mulf %77, %51 : vector<64x1xf32>
    %79 = arith.mulf %78, %57 : vector<64x1xf32>
    %80 = arith.addf %74, %79 : vector<64x1xf32>
    %cst_43 = arith.constant 0.000000e+00 : f32
    %81 = vector.broadcast %cst_43 : f32 to vector<64x1xf32>
    %82 = arith.select %10, %80, %81 : vector<64x1xi1>, vector<64x1xf32>
    %83 = arith.mulf %23, %39 : vector<64x32xf32>
    %cst_44 = arith.constant dense<0.000000e+00> : vector<64xf32>
    %84 = vector.multi_reduction <add>, %83, %cst_44 [1] : vector<64x32xf32> to vector<64xf32>
    %85 = vector.shape_cast %84 : vector<64xf32> to vector<64x1xf32>
    %86 = arith.mulf %85, %45 : vector<64x1xf32>
    %87 = arith.mulf %86, %69 : vector<64x1xf32>
    %88 = arith.mulf %36, %39 : vector<64x32xf32>
    %cst_45 = arith.constant dense<0.000000e+00> : vector<64xf32>
    %89 = vector.multi_reduction <add>, %88, %cst_45 [1] : vector<64x32xf32> to vector<64xf32>
    %90 = vector.shape_cast %89 : vector<64xf32> to vector<64x1xf32>
    %91 = arith.mulf %90, %51 : vector<64x1xf32>
    %92 = arith.mulf %91, %69 : vector<64x1xf32>
    %93 = arith.addf %87, %92 : vector<64x1xf32>
    %cst_46 = arith.constant 0.000000e+00 : f32
    %94 = vector.broadcast %cst_46 : f32 to vector<64x1xf32>
    %95 = arith.select %10, %93, %94 : vector<64x1xi1>, vector<64x1xf32>
    %c0_47 = arith.constant 0 : index
    %c0_48 = arith.constant 0 : index
    %96 = vector.load %arg13[%c0_47, %c0_48] : memref<64x1xf32, #tpu.memory_space<vmem>>, vector<64x1xf32>
    %97 = arith.addf %96, %82 : vector<64x1xf32>
    %c0_49 = arith.constant 0 : index
    %c0_50 = arith.constant 0 : index
    %98 = vector.load %arg13[%c0_49, %c0_50] : memref<64x1xf32, #tpu.memory_space<vmem>>, vector<64x1xf32>
    tpu.vector_store %arg13[%c0_49, %c0_50], %97 {strides = array<i32>} : memref<64x1xf32, #tpu.memory_space<vmem>>, vector<64x1xf32>,
    %c0_51 = arith.constant 0 : index
    %c0_52 = arith.constant 0 : index
    %99 = vector.load %arg14[%c0_51, %c0_52] : memref<64x1xf32, #tpu.memory_space<vmem>>, vector<64x1xf32>
    %100 = arith.addf %99, %95 : vector<64x1xf32>
    %c0_53 = arith.constant 0 : index
    %c0_54 = arith.constant 0 : index
    %101 = vector.load %arg14[%c0_53, %c0_54] : memref<64x1xf32, #tpu.memory_space<vmem>>, vector<64x1xf32>
    tpu.vector_store %arg14[%c0_53, %c0_54], %100 {strides = array<i32>} : memref<64x1xf32, #tpu.memory_space<vmem>>, vector<64x1xf32>,
    %c1_i32 = arith.constant 1 : i32
    %102 = arith.cmpi eq, %arg1, %c1_i32 : i32
    %103 = arith.extui %102 : i1 to i32
    %c0_i32_55 = arith.constant 0 : i32
    %104 = arith.cmpi ne, %103, %c0_i32_55 : i32
    scf.if %104 {
      %cst_56 = arith.constant 0.000000e+00 : f32
      %105 = vector.broadcast %cst_56 : f32 to vector<8x128xf32>
      %c0_57 = arith.constant 0 : index
      %c0_58 = arith.constant 0 : index
      %106 = vector.load %arg13[%c0_57, %c0_58] : memref<64x1xf32, #tpu.memory_space<vmem>>, vector<64x1xf32>
      %107 = vector.shape_cast %106 : vector<64x1xf32> to vector<1x64x1xf32>
      %cst_59 = arith.constant dense<0.000000e+00> : vector<1xf32>
      %108 = vector.multi_reduction <add>, %107, %cst_59 [1, 2] : vector<1x64x1xf32> to vector<1xf32>
      %109 = vector.shape_cast %108 : vector<1xf32> to vector<1x1x1xf32>
      %110 = vector.extract %109[0, 0, 0] : f32 from vector<1x1x1xf32>
      %111 = vector.broadcast %110 : f32 to vector<8x128xf32>
      %112 = arith.addf %105, %111 : vector<8x128xf32>
      %c0_60 = arith.constant 0 : index
      %c0_61 = arith.constant 0 : index
      %113 = vector.load %arg11[%c0_60, %c0_61] : memref<8x128xf32, #tpu.memory_space<vmem>>, vector<8x128xf32>
      tpu.vector_store %arg11[%c0_60, %c0_61], %112 {strides = array<i32>} : memref<8x128xf32, #tpu.memory_space<vmem>>, vector<8x128xf32>,
      %cst_62 = arith.constant 0.000000e+00 : f32
      %114 = vector.broadcast %cst_62 : f32 to vector<8x128xf32>
      %c0_63 = arith.constant 0 : index
      %c0_64 = arith.constant 0 : index
      %115 = vector.load %arg14[%c0_63, %c0_64] : memref<64x1xf32, #tpu.memory_space<vmem>>, vector<64x1xf32>
      %116 = vector.shape_cast %115 : vector<64x1xf32> to vector<1x64x1xf32>
      %cst_65 = arith.constant dense<0.000000e+00> : vector<1xf32>
      %117 = vector.multi_reduction <add>, %116, %cst_65 [1, 2] : vector<1x64x1xf32> to vector<1xf32>
      %118 = vector.shape_cast %117 : vector<1xf32> to vector<1x1x1xf32>
      %119 = vector.extract %118[0, 0, 0] : f32 from vector<1x1x1xf32>
      %120 = vector.broadcast %119 : f32 to vector<8x128xf32>
      %121 = arith.addf %114, %120 : vector<8x128xf32>
      %c0_66 = arith.constant 0 : index
      %c0_67 = arith.constant 0 : index
      %122 = vector.load %arg12[%c0_66, %c0_67] : memref<8x128xf32, #tpu.memory_space<vmem>>, vector<8x128xf32>
      tpu.vector_store %arg12[%c0_66, %c0_67], %121 {strides = array<i32>} : memref<8x128xf32, #tpu.memory_space<vmem>>, vector<8x128xf32>,
    } else {
    }
    return
  }
  func.func @transform_0(%arg0: i32, %arg1: i32) -> (i32, i32) {
    %c2_i32 = arith.constant 2 : i32
    %0 = arith.muli %arg0, %c2_i32 : i32
    %1 = arith.addi %0, %arg1 : i32
    %c3_i32 = arith.constant 3 : i32
    %2 = arith.minsi %1, %c3_i32 : i32
    %c0_i32 = arith.constant 0 : i32
    %c0_i32_0 = arith.constant 0 : i32
    return %2, %c0_i32 : i32, i32
  }
  func.func @transform_1(%arg0: i32, %arg1: i32) -> (i32, i32) {
    %c2_i32 = arith.constant 2 : i32
    %0 = arith.muli %arg0, %c2_i32 : i32
    %1 = arith.addi %0, %arg1 : i32
    %c3_i32 = arith.constant 3 : i32
    %2 = arith.minsi %1, %c3_i32 : i32
    %c0_i32 = arith.constant 0 : i32
    %c0_i32_0 = arith.constant 0 : i32
    return %2, %c0_i32 : i32, i32
  }
  func.func @transform_2(%arg0: i32, %arg1: i32) -> (i32, i32) {
    %c2_i32 = arith.constant 2 : i32
    %0 = arith.muli %arg0, %c2_i32 : i32
    %1 = arith.addi %0, %arg1 : i32
    %c3_i32 = arith.constant 3 : i32
    %2 = arith.minsi %1, %c3_i32 : i32
    %c0_i32 = arith.constant 0 : i32
    %c0_i32_0 = arith.constant 0 : i32
    return %2, %c0_i32 : i32, i32
  }
  func.func @transform_3(%arg0: i32, %arg1: i32) -> (i32, i32) {
    %c2_i32 = arith.constant 2 : i32
    %0 = arith.muli %arg0, %c2_i32 : i32
    %1 = arith.addi %0, %arg1 : i32
    %c3_i32 = arith.constant 3 : i32
    %2 = arith.minsi %1, %c3_i32 : i32
    %c0_i32 = arith.constant 0 : i32
    %c0_i32_0 = arith.constant 0 : i32
    return %2, %c0_i32 : i32, i32
  }
  func.func @transform_4(%arg0: i32, %arg1: i32) -> (i32, i32) {
    %c2_i32 = arith.constant 2 : i32
    %0 = arith.muli %arg0, %c2_i32 : i32
    %1 = arith.addi %0, %arg1 : i32
    %c3_i32 = arith.constant 3 : i32
    %2 = arith.minsi %1, %c3_i32 : i32
    %c0_i32 = arith.constant 0 : i32
    %c0_i32_0 = arith.constant 0 : i32
    return %2, %c0_i32 : i32, i32
  }
  func.func @transform_5(%arg0: i32, %arg1: i32) -> (i32, i32) {
    %c0_i32 = arith.constant 0 : i32
    %c0_i32_0 = arith.constant 0 : i32
    %c0_i32_1 = arith.constant 0 : i32
    return %c0_i32, %c0_i32_0 : i32, i32
  }
  func.func @transform_6(%arg0: i32, %arg1: i32) -> (i32, i32) {
    %c0_i32 = arith.constant 0 : i32
    %c0_i32_0 = arith.constant 0 : i32
    %c0_i32_1 = arith.constant 0 : i32
    return %c0_i32, %c0_i32_0 : i32, i32
  }
  func.func @transform_7(%arg0: i32, %arg1: i32) -> (i32, i32) {
    %c0_i32 = arith.constant 0 : i32
    %c0_i32_0 = arith.constant 0 : i32
    %c0_i32_1 = arith.constant 0 : i32
    return %c0_i32, %c0_i32_0 : i32, i32
  }
  func.func @transform_8(%arg0: i32, %arg1: i32) -> (i32, i32) {
    %c0_i32 = arith.constant 0 : i32
    %c0_i32_0 = arith.constant 0 : i32
    %c0_i32_1 = arith.constant 0 : i32
    return %c0_i32, %c0_i32_0 : i32, i32
  }
  func.func @transform_9(%arg0: i32, %arg1: i32) -> (i32, i32) {
    %c0_i32 = arith.constant 0 : i32
    %c0_i32_0 = arith.constant 0 : i32
    return %arg0, %c0_i32 : i32, i32
  }
  func.func @transform_10(%arg0: i32, %arg1: i32) -> (i32, i32) {
    %c0_i32 = arith.constant 0 : i32
    %c0_i32_0 = arith.constant 0 : i32
    return %arg0, %c0_i32 : i32, i32
  }
}

</mosaic_0001>

<llo_original>
// kernel: tpu_custom_call.1
$region0: #{tpu_custom_call.1}
  #allocation0 [shape = 'u32[]', space=smem, size = 0x4, offset = 0x4, fixed_abs, tag = 'smem constant byte address 0x4 - core index']
  #allocation1 [shape = 'u32[144,128]{1,0:T(1,128)}', space=vmem, size = 0x12000, scoped, tag = 'internal scratch']
  #allocation2 [shape = 'f32[64,1]{1,0:T(8,128)}', space=vmem, size = 0x8000, scoped, tag = 'scratch operand']
  #allocation3 [shape = 'f32[64,1]{1,0:T(8,128)}', space=vmem, size = 0x8000, scoped, tag = 'scratch operand']
  %s0 = inlined_call_operand.vmem [shape: f32[200,32], index: 0, kind: input, shape index: {}]
  %s1 = inlined_call_operand.vmem [shape: f32[200,32], index: 1, kind: input, shape index: {}]
  %s2 = inlined_call_operand.vmem [shape: f32[200,32], index: 2, kind: input, shape index: {}]
  %s3 = inlined_call_operand.vmem [shape: f32[200,32], index: 3, kind: input, shape index: {}]
  %s4 = inlined_call_operand.vmem [shape: f32[200,32], index: 4, kind: input, shape index: {}]
  %s5 = inlined_call_operand.vmem [shape: f32[32,64], index: 5, kind: input, shape index: {}]
  %s6 = inlined_call_operand.vmem [shape: f32[1,64], index: 6, kind: input, shape index: {}]
  %s7 = inlined_call_operand.vmem [shape: f32[64,32], index: 7, kind: input, shape index: {}]
  %s8 = inlined_call_operand.vmem [shape: f32[1,32], index: 8, kind: input, shape index: {}]
  %s9 = inlined_call_operand.hbm [shape: f32[16,128], index: 9, kind: output, shape index: {0}]
  %s10 = inlined_call_operand.hbm [shape: f32[16,128], index: 10, kind: output, shape index: {1}]
  %11 = xla_tuple %s9, %s10
  %s12 = sld [smem:[#allocation0]]
  $region85: #{tpu_custom_call.1} parent=0
    _
  %s14 = ssub.s32 1, %s12
  %s15 = scalar_select 0, %s14, %s12
  $region1: #{tpu_custom_call.1} parent=0
    #allocation4 [shape = 'u8[8192]{0}', space=vmem, size = 0x2000, scoped, tag = 'output window, operand 0']
    #allocation5 [shape = 's32[2]{0}', space=sflag, size = 0x8, scoped, tag = 'scoped memory for tpu_custom_call.1']
    #allocation6 [shape = 'u8[8192]{0}', space=vmem, size = 0x2000, scoped, tag = 'output window, operand 1']
    #allocation7 [shape = 's32[2]{0}', space=sflag, size = 0x8, scoped, tag = 'scoped memory for tpu_custom_call.1']
    %16 = vsyncpa [#allocation5], 0
    %s17 = scalar_lea.sflag [#allocation5], 1
    %18 = vsyncpa %s17, 0
    %19 = vsyncpa [#allocation7], 0
    %s20 = scalar_lea.sflag [#allocation7], 1
    %21 = vsyncpa %s20, 0
    loop: start=0, step=1, limit=6
    $region2: #{tpu_custom_call.1} parent=1 // loop_pre_header
      _
    $region3: #{tpu_custom_call.1} parent=1 // loop_header
      %s23 = sphi 0, %s27
      %p24 = scmp.ge.s32.totalorder %s23, 6
      %s30 = sphi 0, %s42
      %s31 = sphi 0, %s38
      %s32 = sphi 0, %s30
      %s33 = sphi 0, %s31
      %s34 = sphi 0, %s32
      %s35 = sphi 0, %s33
      %s53 = sphi 0, %s55
      %s56 = sphi 0, %s53
      %s57 = sphi 0, %s56
      %s73 = sphi 0, %s57
      %s87 = sphi 0, %s89
      %s90 = sphi 0, %s87
      %s91 = sphi 0, %s90
      %s107 = sphi 0, %s91
      %s121 = sphi 0, %s123
      %s124 = sphi 0, %s121
      %s125 = sphi 0, %s124
      %s141 = sphi 0, %s125
      %s155 = sphi 0, %s157
      %s158 = sphi 0, %s155
      %s159 = sphi 0, %s158
      %s175 = sphi 0, %s159
      %s189 = sphi 0, %s191
      %s192 = sphi 0, %s189
      %s193 = sphi 0, %s192
      %s209 = sphi 0, %s193
      %s213 = sphi 0, %s213
      %s215 = sphi 0, %s213
      %s216 = sphi 0, %s215
      %s230 = sphi 0, %s216
      %s234 = sphi 0, %s234
      %s236 = sphi 0, %s234
      %s237 = sphi 0, %s236
      %s251 = sphi 0, %s237
      %s255 = sphi 0, %s255
      %s257 = sphi 0, %s255
      %s258 = sphi 0, %s257
      %s272 = sphi 0, %s258
      %s276 = sphi 0, %s276
      %s278 = sphi 0, %s276
      %s279 = sphi 0, %s278
      %s293 = sphi 0, %s279
      %s299 = sphi 0, %s301
      %s302 = sphi 0, %s299
      %s303 = sphi 0, %s302
      %s319 = sphi 0, %s303
      %s325 = sphi 0, %s327
      %s328 = sphi 0, %s325
      %s329 = sphi 0, %s328
      %s345 = sphi 0, %s329
    $region4: #{tpu_custom_call.1} parent=1 // loop_header_branch
      %26 = sbr.rel (%p24) target = $region8
    $region5: #{tpu_custom_call.1} parent=1 // loop_body
      %s28 = ssub.s32 %s23, 1
      %s29 = ssub.s32 %s23, 2
      %s36 = sadd.s32 1, %s31
      %p37 = scmp.ge.s32.totalorder %s36, 2
      %s38 = scalar_select %p37, 0, %s36
      %s39 = sadd.s32 1, %s30
      %s40 = scalar_select %p37, %s39, %s30
      %p41 = scmp.ge.s32.totalorder %s40, 2
      %s42 = scalar_select %p41, 0, %s40
      %s43 = smul.u32 %s30, 2
      %s44 = sadd.s32 %s43, %s31
      %p45 = scmp.lt.s32.totalorder %s44, 3
      %s46 = scalar_select %p45, %s44, 3
      %s47 = smul.u32 %s42, 2
      %s48 = sadd.s32 %s47, %s38
      %p49 = scmp.lt.s32.totalorder %s48, 3
      %s50 = scalar_select %p49, %s48, 3
      %s51 = ssub.s32 %s46, %s50
      %p52 = scmp.eq.s32.totalorder %s51, 0
      %s54 = sadd.s32 %s53, 1
      %s55 = scalar_select %p52, %s53, %s54
      %p58 = pneg %p52
      %p59 = scmp.eq.s32.totalorder %s23, 3
      %p60 = por %p58, %p59
      %p61 = scmp.ne.s32.totalorder %s53, %s56
      %p62 = scmp.eq.s32.totalorder %s23, 0
      %p63 = por %p61, %p62
      %p64 = scmp.ne.s32.totalorder %s53, %s56
      %p65 = scmp.eq.s32.totalorder %s28, 3
      %p66 = por %p64, %p65
      %p67 = scmp.ne.s32.totalorder %s56, %s57
      %p68 = scmp.eq.s32.totalorder %s28, 0
      %p69 = por %p67, %p68
      %p70 = scmp.ne.s32.totalorder %s56, %s57
      %p71 = scmp.eq.s32.totalorder %s29, 3
      %p72 = por %p70, %p71
      %p74 = scmp.ne.s32.totalorder %s57, %s73
      %p75 = scmp.eq.s32.totalorder %s29, 0
      %p76 = por %p74, %p75
      %s77 = smul.u32 %s30, 2
      %s78 = sadd.s32 %s77, %s31
      %p79 = scmp.lt.s32.totalorder %s78, 3
      %s80 = scalar_select %p79, %s78, 3
      %s81 = smul.u32 %s42, 2
      %s82 = sadd.s32 %s81, %s38
      %p83 = scmp.lt.s32.totalorder %s82, 3
      %s84 = scalar_select %p83, %s82, 3
      %s85 = ssub.s32 %s80, %s84
      %p86 = scmp.eq.s32.totalorder %s85, 0
      %s88 = sadd.s32 %s87, 1
      %s89 = scalar_select %p86, %s87, %s88
      %p92 = pneg %p86
      %p93 = scmp.eq.s32.totalorder %s23, 3
      %p94 = por %p92, %p93
      %p95 = scmp.ne.s32.totalorder %s87, %s90
      %p96 = scmp.eq.s32.totalorder %s23, 0
      %p97 = por %p95, %p96
      %p98 = scmp.ne.s32.totalorder %s87, %s90
      %p99 = scmp.eq.s32.totalorder %s28, 3
      %p100 = por %p98, %p99
      %p101 = scmp.ne.s32.totalorder %s90, %s91
      %p102 = scmp.eq.s32.totalorder %s28, 0
      %p103 = por %p101, %p102
      %p104 = scmp.ne.s32.totalorder %s90, %s91
      %p105 = scmp.eq.s32.totalorder %s29, 3
      %p106 = por %p104, %p105
      %p108 = scmp.ne.s32.totalorder %s91, %s107
      %p109 = scmp.eq.s32.totalorder %s29, 0
      %p110 = por %p108, %p109
      %s111 = smul.u32 %s30, 2
      %s112 = sadd.s32 %s111, %s31
      %p113 = scmp.lt.s32.totalorder %s112, 3
      %s114 = scalar_select %p113, %s112, 3
      %s115 = smul.u32 %s42, 2
      %s116 = sadd.s32 %s115, %s38
      %p117 = scmp.lt.s32.totalorder %s116, 3
      %s118 = scalar_select %p117, %s116, 3
      %s119 = ssub.s32 %s114, %s118
      %p120 = scmp.eq.s32.totalorder %s119, 0
      %s122 = sadd.s32 %s121, 1
      %s123 = scalar_select %p120, %s121, %s122
      %p126 = pneg %p120
      %p127 = scmp.eq.s32.totalorder %s23, 3
      %p128 = por %p126, %p127
      %p129 = scmp.ne.s32.totalorder %s121, %s124
      %p130 = scmp.eq.s32.totalorder %s23, 0
      %p131 = por %p129, %p130
      %p132 = scmp.ne.s32.totalorder %s121, %s124
      %p133 = scmp.eq.s32.totalorder %s28, 3
      %p134 = por %p132, %p133
      %p135 = scmp.ne.s32.totalorder %s124, %s125
      %p136 = scmp.eq.s32.totalorder %s28, 0
      %p137 = por %p135, %p136
      %p138 = scmp.ne.s32.totalorder %s124, %s125
      %p139 = scmp.eq.s32.totalorder %s29, 3
      %p140 = por %p138, %p139
      %p142 = scmp.ne.s32.totalorder %s125, %s141
      %p143 = scmp.eq.s32.totalorder %s29, 0
      %p144 = por %p142, %p143
      %s145 = smul.u32 %s30, 2
      %s146 = sadd.s32 %s145, %s31
      %p147 = scmp.lt.s32.totalorder %s146, 3
      %s148 = scalar_select %p147, %s146, 3
      %s149 = smul.u32 %s42, 2
      %s150 = sadd.s32 %s149, %s38
      %p151 = scmp.lt.s32.totalorder %s150, 3
      %s152 = scalar_select %p151, %s150, 3
      %s153 = ssub.s32 %s148, %s152
      %p154 = scmp.eq.s32.totalorder %s153, 0
      %s156 = sadd.s32 %s155, 1
      %s157 = scalar_select %p154, %s155, %s156
      %p160 = pneg %p154
      %p161 = scmp.eq.s32.totalorder %s23, 3
      %p162 = por %p160, %p161
      %p163 = scmp.ne.s32.totalorder %s155, %s158
      %p164 = scmp.eq.s32.totalorder %s23, 0
      %p165 = por %p163, %p164
      %p166 = scmp.ne.s32.totalorder %s155, %s158
      %p167 = scmp.eq.s32.totalorder %s28, 3
      %p168 = por %p166, %p167
      %p169 = scmp.ne.s32.totalorder %s158, %s159
      %p170 = scmp.eq.s32.totalorder %s28, 0
      %p171 = por %p169, %p170
      %p172 = scmp.ne.s32.totalorder %s158, %s159
      %p173 = scmp.eq.s32.totalorder %s29, 3
      %p174 = por %p172, %p173
      %p176 = scmp.ne.s32.totalorder %s159, %s175
      %p177 = scmp.eq.s32.totalorder %s29, 0
      %p178 = por %p176, %p177
      %s179 = smul.u32 %s30, 2
      %s180 = sadd.s32 %s179, %s31
      %p181 = scmp.lt.s32.totalorder %s180, 3
      %s182 = scalar_select %p181, %s180, 3
      %s183 = smul.u32 %s42, 2
      %s184 = sadd.s32 %s183, %s38
      %p185 = scmp.lt.s32.totalorder %s184, 3
      %s186 = scalar_select %p185, %s184, 3
      %s187 = ssub.s32 %s182, %s186
      %p188 = scmp.eq.s32.totalorder %s187, 0
      %s190 = sadd.s32 %s189, 1
      %s191 = scalar_select %p188, %s189, %s190
      %p194 = pneg %p188
      %p195 = scmp.eq.s32.totalorder %s23, 3
      %p196 = por %p194, %p195
      %p197 = scmp.ne.s32.totalorder %s189, %s192
      %p198 = scmp.eq.s32.totalorder %s23, 0
      %p199 = por %p197, %p198
      %p200 = scmp.ne.s32.totalorder %s189, %s192
      %p201 = scmp.eq.s32.totalorder %s28, 3
      %p202 = por %p200, %p201
      %p203 = scmp.ne.s32.totalorder %s192, %s193
      %p204 = scmp.eq.s32.totalorder %s28, 0
      %p205 = por %p203, %p204
      %p206 = scmp.ne.s32.totalorder %s192, %s193
      %p207 = scmp.eq.s32.totalorder %s29, 3
      %p208 = por %p206, %p207
      %p210 = scmp.ne.s32.totalorder %s193, %s209
      %p211 = scmp.eq.s32.totalorder %s29, 0
      %p212 = por %p210, %p211
      %s214 = sadd.s32 %s213, 1
      %p217 = scmp.eq.s32.totalorder %s23, 3
      %p218 = scmp.ne.s32.totalorder %s213, %s215
      %p219 = scmp.eq.s32.totalorder %s23, 0
      %p220 = por %p218, %p219
      %p221 = scmp.ne.s32.totalorder %s213, %s215
      %p222 = scmp.eq.s32.totalorder %s28, 3
      %p223 = por %p221, %p222
      %p224 = scmp.ne.s32.totalorder %s215, %s216
      %p225 = scmp.eq.s32.totalorder %s28, 0
      %p226 = por %p224, %p225
      %p227 = scmp.ne.s32.totalorder %s215, %s216
      %p228 = scmp.eq.s32.totalorder %s29, 3
      %p229 = por %p227, %p228
      %p231 = scmp.ne.s32.totalorder %s216, %s230
      %p232 = scmp.eq.s32.totalorder %s29, 0
      %p233 = por %p231, %p232
      %s235 = sadd.s32 %s234, 1
      %p238 = scmp.eq.s32.totalorder %s23, 3
      %p239 = scmp.ne.s32.totalorder %s234, %s236
      %p240 = scmp.eq.s32.totalorder %s23, 0
      %p241 = por %p239, %p240
      %p242 = scmp.ne.s32.totalorder %s234, %s236
      %p243 = scmp.eq.s32.totalorder %s28, 3
      %p244 = por %p242, %p243
      %p245 = scmp.ne.s32.totalorder %s236, %s237
      %p246 = scmp.eq.s32.totalorder %s28, 0
      %p247 = por %p245, %p246
      %p248 = scmp.ne.s32.totalorder %s236, %s237
      %p249 = scmp.eq.s32.totalorder %s29, 3
      %p250 = por %p248, %p249
      %p252 = scmp.ne.s32.totalorder %s237, %s251
      %p253 = scmp.eq.s32.totalorder %s29, 0
      %p254 = por %p252, %p253
      %s256 = sadd.s32 %s255, 1
      %p259 = scmp.eq.s32.totalorder %s23, 3
      %p260 = scmp.ne.s32.totalorder %s255, %s257
      %p261 = scmp.eq.s32.totalorder %s23, 0
      %p262 = por %p260, %p261
      %p263 = scmp.ne.s32.totalorder %s255, %s257
      %p264 = scmp.eq.s32.totalorder %s28, 3
      %p265 = por %p263, %p264
      %p266 = scmp.ne.s32.totalorder %s257, %s258
      %p267 = scmp.eq.s32.totalorder %s28, 0
      %p268 = por %p266, %p267
      %p269 = scmp.ne.s32.totalorder %s257, %s258
      %p270 = scmp.eq.s32.totalorder %s29, 3
      %p271 = por %p269, %p270
      %p273 = scmp.ne.s32.totalorder %s258, %s272
      %p274 = scmp.eq.s32.totalorder %s29, 0
      %p275 = por %p273, %p274
      %s277 = sadd.s32 %s276, 1
      %p280 = scmp.eq.s32.totalorder %s23, 3
      %p281 = scmp.ne.s32.totalorder %s276, %s278
      %p282 = scmp.eq.s32.totalorder %s23, 0
      %p283 = por %p281, %p282
      %p284 = scmp.ne.s32.totalorder %s276, %s278
      %p285 = scmp.eq.s32.totalorder %s28, 3
      %p286 = por %p284, %p285
      %p287 = scmp.ne.s32.totalorder %s278, %s279
      %p288 = scmp.eq.s32.totalorder %s28, 0
      %p289 = por %p287, %p288
      %p290 = scmp.ne.s32.totalorder %s278, %s279
      %p291 = scmp.eq.s32.totalorder %s29, 3
      %p292 = por %p290, %p291
      %p294 = scmp.ne.s32.totalorder %s279, %s293
      %p295 = scmp.eq.s32.totalorder %s29, 0
      %p296 = por %p294, %p295
      %s297 = ssub.s32 %s30, %s42
      %p298 = scmp.eq.s32.totalorder %s297, 0
      %s300 = sadd.s32 %s299, 1
      %s301 = scalar_select %p298, %s299, %s300
      %p304 = pneg %p298
      %p305 = scmp.eq.s32.totalorder %s23, 3
      %p306 = por %p304, %p305
      %p307 = scmp.ne.s32.totalorder %s299, %s302
      %p308 = scmp.eq.s32.totalorder %s23, 0
      %p309 = por %p307, %p308
      %p310 = scmp.ne.s32.totalorder %s299, %s302
      %p311 = scmp.eq.s32.totalorder %s28, 3
      %p312 = por %p310, %p311
      %p313 = scmp.ne.s32.totalorder %s302, %s303
      %p314 = scmp.eq.s32.totalorder %s28, 0
      %p315 = por %p313, %p314
      %p316 = scmp.ne.s32.totalorder %s302, %s303
      %p317 = scmp.eq.s32.totalorder %s29, 3
      %p318 = por %p316, %p317
      %p320 = scmp.ne.s32.totalorder %s303, %s319
      %p321 = scmp.eq.s32.totalorder %s29, 0
      %p322 = por %p320, %p321
      %s323 = ssub.s32 %s30, %s42
      %p324 = scmp.eq.s32.totalorder %s323, 0
      %s326 = sadd.s32 %s325, 1
      %s327 = scalar_select %p324, %s325, %s326
      %p330 = pneg %p324
      %p331 = scmp.eq.s32.totalorder %s23, 3
      %p332 = por %p330, %p331
      %p333 = scmp.ne.s32.totalorder %s325, %s328
      %p334 = scmp.eq.s32.totalorder %s23, 0
      %p335 = por %p333, %p334
      %p336 = scmp.ne.s32.totalorder %s325, %s328
      %p337 = scmp.eq.s32.totalorder %s28, 3
      %p338 = por %p336, %p337
      %p339 = scmp.ne.s32.totalorder %s328, %s329
      %p340 = scmp.eq.s32.totalorder %s28, 0
      %p341 = por %p339, %p340
      %p342 = scmp.ne.s32.totalorder %s328, %s329
      %p343 = scmp.eq.s32.totalorder %s29, 3
      %p344 = por %p342, %p343
      %p346 = scmp.ne.s32.totalorder %s329, %s345
      %p347 = scmp.eq.s32.totalorder %s29, 0
      %p348 = por %p346, %p347
      %p349 = scmp.le.s32.totalorder 1, %s23
      %p350 = scmp.lt.s32.totalorder %s23, 5
      %p351 = pnand %p349, %p350
      %p352 = pneg %p351
      // Predicated region
      $region9: #{tpu_custom_call.1} parent=5 // pred_check
        _
      $region10: #{tpu_custom_call.1} parent=5 // pred_check_branch
        %354 = sbr.rel (%p351) target = $region12
      $region11: #{tpu_custom_call.1} parent=5 // pred_region
        %s355 = ssub.s32 %s23, 1
        // Predicated region
        $region13: #{tpu_custom_call.1} parent=11 // pred_check
          %p356 = pneg %p226
        $region14: #{tpu_custom_call.1} parent=11 // pred_check_branch
          %358 = sbr.rel (%p356) target = $region16
        $region15: #{tpu_custom_call.1} parent=11 // pred_region
          _
        $region16: #{tpu_custom_call.1} parent=11 // pred_fallthru
          _
        // Predicated region
        $region17: #{tpu_custom_call.1} parent=11 // pred_check
          %p359 = pneg %p247
        $region18: #{tpu_custom_call.1} parent=11 // pred_check_branch
          %361 = sbr.rel (%p359) target = $region20
        $region19: #{tpu_custom_call.1} parent=11 // pred_region
          _
        $region20: #{tpu_custom_call.1} parent=11 // pred_fallthru
          _
        // Predicated region
        $region21: #{tpu_custom_call.1} parent=11 // pred_check
          %p362 = pneg %p268
        $region22: #{tpu_custom_call.1} parent=11 // pred_check_branch
          %364 = sbr.rel (%p362) target = $region24
        $region23: #{tpu_custom_call.1} parent=11 // pred_region
          _
        $region24: #{tpu_custom_call.1} parent=11 // pred_fallthru
          _
        // Predicated region
        $region25: #{tpu_custom_call.1} parent=11 // pred_check
          %p365 = pneg %p289
        $region26: #{tpu_custom_call.1} parent=11 // pred_check_branch
          %367 = sbr.rel (%p365) target = $region28
        $region27: #{tpu_custom_call.1} parent=11 // pred_region
          _
        $region28: #{tpu_custom_call.1} parent=11 // pred_fallthru
          _
      $region12: #{tpu_custom_call.1} parent=5 // pred_fallthru
        _
      %p368 = scmp.lt.s32.totalorder %s23, 4
      // Predicated region
      $region29: #{tpu_custom_call.1} parent=5 // pred_check
        %p369 = pneg %p368
      $region30: #{tpu_custom_call.1} parent=5 // pred_check_branch
        %371 = sbr.rel (%p369) target = $region32
      $region31: #{tpu_custom_call.1} parent=5 // pred_region
        // Predicated region
        $region33: #{tpu_custom_call.1} parent=31 // pred_check
          %p372 = pneg %p63
        $region34: #{tpu_custom_call.1} parent=31 // pred_check_branch
          %374 = sbr.rel (%p372) target = $region36
        $region35: #{tpu_custom_call.1} parent=31 // pred_region
          %s375 = smul.u32 %s30, 2
          %s376 = sadd.s32 %s375, %s31
          %p377 = scmp.lt.s32.totalorder %s376, 3
          %s378 = scalar_select %p377, %s376, 3
          %s379 = smul.u32 8, %s378
          %s380 = ssub.s32 25, %s379
          %p381 = scmp.lt.s32.totalorder %s380, 8
          %s382 = scalar_select %p381, %s380, 8
          %s383 = smul.u32 128, %s382
          %p384 = scmp.lt.s32.totalorder %s379, 24
          %s385 = scalar_select %p384, %s379, 24
          %s386 = smul.addr %s385, 8
          %s387 = scalar_lea.vmem %s0, %s386
          %s388 = smul.u32 %s30, 2
          %s389 = sadd.s32 %s388, %s31
          %p390 = scmp.lt.s32.totalorder %s389, 3
          %s391 = scalar_select %p390, %s389, 3
          %s392 = smul.u32 8, %s391
          %s393 = ssub.s32 25, %s392
          %p394 = scmp.lt.s32.totalorder %s393, 8
          %s395 = scalar_select %p394, %s393, 8
          %s396 = smul.u32 128, %s395
        $region36: #{tpu_custom_call.1} parent=31 // pred_fallthru
          _
        // Predicated region
        $region37: #{tpu_custom_call.1} parent=31 // pred_check
          %p397 = pneg %p97
        $region38: #{tpu_custom_call.1} parent=31 // pred_check_branch
          %399 = sbr.rel (%p397) target = $region40
        $region39: #{tpu_custom_call.1} parent=31 // pred_region
          %s400 = smul.u32 %s30, 2
          %s401 = sadd.s32 %s400, %s31
          %p402 = scmp.lt.s32.totalorder %s401, 3
          %s403 = scalar_select %p402, %s401, 3
          %s404 = smul.u32 8, %s403
          %s405 = ssub.s32 25, %s404
          %p406 = scmp.lt.s32.totalorder %s405, 8
          %s407 = scalar_select %p406, %s405, 8
          %s408 = smul.u32 128, %s407
          %p409 = scmp.lt.s32.totalorder %s404, 24
          %s410 = scalar_select %p409, %s404, 24
          %s411 = smul.addr %s410, 8
          %s412 = scalar_lea.vmem %s1, %s411
          %s413 = smul.u32 %s30, 2
          %s414 = sadd.s32 %s413, %s31
          %p415 = scmp.lt.s32.totalorder %s414, 3
          %s416 = scalar_select %p415, %s414, 3
          %s417 = smul.u32 8, %s416
          %s418 = ssub.s32 25, %s417
          %p419 = scmp.lt.s32.totalorder %s418, 8
          %s420 = scalar_select %p419, %s418, 8
          %s421 = smul.u32 128, %s420
        $region40: #{tpu_custom_call.1} parent=31 // pred_fallthru
          _
        // Predicated region
        $region41: #{tpu_custom_call.1} parent=31 // pred_check
          %p422 = pneg %p131
        $region42: #{tpu_custom_call.1} parent=31 // pred_check_branch
          %424 = sbr.rel (%p422) target = $region44
        $region43: #{tpu_custom_call.1} parent=31 // pred_region
          %s425 = smul.u32 %s30, 2
          %s426 = sadd.s32 %s425, %s31
          %p427 = scmp.lt.s32.totalorder %s426, 3
          %s428 = scalar_select %p427, %s426, 3
          %s429 = smul.u32 8, %s428
          %s430 = ssub.s32 25, %s429
          %p431 = scmp.lt.s32.totalorder %s430, 8
          %s432 = scalar_select %p431, %s430, 8
          %s433 = smul.u32 128, %s432
          %p434 = scmp.lt.s32.totalorder %s429, 24
          %s435 = scalar_select %p434, %s429, 24
          %s436 = smul.addr %s435, 8
          %s437 = scalar_lea.vmem %s2, %s436
          %s438 = smul.u32 %s30, 2
          %s439 = sadd.s32 %s438, %s31
          %p440 = scmp.lt.s32.totalorder %s439, 3
          %s441 = scalar_select %p440, %s439, 3
          %s442 = smul.u32 8, %s441
          %s443 = ssub.s32 25, %s442
          %p444 = scmp.lt.s32.totalorder %s443, 8
          %s445 = scalar_select %p444, %s443, 8
          %s446 = smul.u32 128, %s445
        $region44: #{tpu_custom_call.1} parent=31 // pred_fallthru
          _
        // Predicated region
        $region45: #{tpu_custom_call.1} parent=31 // pred_check
          %p447 = pneg %p165
        $region46: #{tpu_custom_call.1} parent=31 // pred_check_branch
          %449 = sbr.rel (%p447) target = $region48
        $region47: #{tpu_custom_call.1} parent=31 // pred_region
          %s450 = smul.u32 %s30, 2
          %s451 = sadd.s32 %s450, %s31
          %p452 = scmp.lt.s32.totalorder %s451, 3
          %s453 = scalar_select %p452, %s451, 3
          %s454 = smul.u32 8, %s453
          %s455 = ssub.s32 25, %s454
          %p456 = scmp.lt.s32.totalorder %s455, 8
          %s457 = scalar_select %p456, %s455, 8
          %s458 = smul.u32 128, %s457
          %p459 = scmp.lt.s32.totalorder %s454, 24
          %s460 = scalar_select %p459, %s454, 24
          %s461 = smul.addr %s460, 8
          %s462 = scalar_lea.vmem %s3, %s461
          %s463 = smul.u32 %s30, 2
          %s464 = sadd.s32 %s463, %s31
          %p465 = scmp.lt.s32.totalorder %s464, 3
          %s466 = scalar_select %p465, %s464, 3
          %s467 = smul.u32 8, %s466
          %s468 = ssub.s32 25, %s467
          %p469 = scmp.lt.s32.totalorder %s468, 8
          %s470 = scalar_select %p469, %s468, 8
          %s471 = smul.u32 128, %s470
        $region48: #{tpu_custom_call.1} parent=31 // pred_fallthru
          _
        // Predicated region
        $region49: #{tpu_custom_call.1} parent=31 // pred_check
          %p472 = pneg %p199
        $region50: #{tpu_custom_call.1} parent=31 // pred_check_branch
          %474 = sbr.rel (%p472) target = $region52
        $region51: #{tpu_custom_call.1} parent=31 // pred_region
          %s475 = smul.u32 %s30, 2
          %s476 = sadd.s32 %s475, %s31
          %p477 = scmp.lt.s32.totalorder %s476, 3
          %s478 = scalar_select %p477, %s476, 3
          %s479 = smul.u32 8, %s478
          %s480 = ssub.s32 25, %s479
          %p481 = scmp.lt.s32.totalorder %s480, 8
          %s482 = scalar_select %p481, %s480, 8
          %s483 = smul.u32 128, %s482
          %p484 = scmp.lt.s32.totalorder %s479, 24
          %s485 = scalar_select %p484, %s479, 24
          %s486 = smul.addr %s485, 8
          %s487 = scalar_lea.vmem %s4, %s486
          %s488 = smul.u32 %s30, 2
          %s489 = sadd.s32 %s488, %s31
          %p490 = scmp.lt.s32.totalorder %s489, 3
          %s491 = scalar_select %p490, %s489, 3
          %s492 = smul.u32 8, %s491
          %s493 = ssub.s32 25, %s492
          %p494 = scmp.lt.s32.totalorder %s493, 8
          %s495 = scalar_select %p494, %s493, 8
          %s496 = smul.u32 128, %s495
        $region52: #{tpu_custom_call.1} parent=31 // pred_fallthru
          _
      $region32: #{tpu_custom_call.1} parent=5 // pred_fallthru
        _
      %p497 = scmp.le.s32.totalorder 1, %s23
      %p498 = scmp.lt.s32.totalorder %s23, 5
      %p499 = pnand %p497, %p498
      %p500 = pneg %p499
      // Predicated region
      $region53: #{tpu_custom_call.1} parent=5 // pred_check
        _
      $region54: #{tpu_custom_call.1} parent=5 // pred_check_branch
        %502 = sbr.rel (%p499) target = $region56
      $region55: #{tpu_custom_call.1} parent=5 // pred_region
        %s503 = ssub.s32 %s23, 1
        %s504 = smul.u32 %s32, 2
        %s505 = sadd.s32 %s504, %s33
        %p506 = scmp.lt.s32.totalorder %s505, 3
        %s507 = scalar_select %p506, %s505, 3
        %s508 = smul.u32 8, %s507
        %s509 = ssub.s32 25, %s508
        %p510 = scmp.lt.s32.totalorder %s509, 8
        %s511 = scalar_select %p510, %s509, 8
        %s512 = smul.u32 128, %s511
        %p513 = scmp.lt.s32.totalorder %s508, 24
        %s514 = scalar_select %p513, %s508, 24
        %s515 = smul.addr %s514, 8
        %s516 = scalar_lea.vmem %s0, %s515
        %p517 = pneg %p69
        %p518 = pneg %p66
        %s519 = smul.u32 %s32, 2
        %s520 = sadd.s32 %s519, %s33
        %p521 = scmp.lt.s32.totalorder %s520, 3
        %s522 = scalar_select %p521, %s520, 3
        %s523 = smul.u32 8, %s522
        %s524 = ssub.s32 25, %s523
        %p525 = scmp.lt.s32.totalorder %s524, 8
        %s526 = scalar_select %p525, %s524, 8
        %s527 = smul.u32 128, %s526
        %p528 = scmp.lt.s32.totalorder %s523, 24
        %s529 = scalar_select %p528, %s523, 24
        %s530 = smul.addr %s529, 8
        %s531 = scalar_lea.vmem %s1, %s530
        %p532 = pneg %p103
        %p533 = pneg %p100
        %s534 = smul.u32 %s32, 2
        %s535 = sadd.s32 %s534, %s33
        %p536 = scmp.lt.s32.totalorder %s535, 3
        %s537 = scalar_select %p536, %s535, 3
        %s538 = smul.u32 8, %s537
        %s539 = ssub.s32 25, %s538
        %p540 = scmp.lt.s32.totalorder %s539, 8
        %s541 = scalar_select %p540, %s539, 8
        %s542 = smul.u32 128, %s541
        %p543 = scmp.lt.s32.totalorder %s538, 24
        %s544 = scalar_select %p543, %s538, 24
        %s545 = smul.addr %s544, 8
        %s546 = scalar_lea.vmem %s2, %s545
        %p547 = pneg %p137
        %p548 = pneg %p134
        %s549 = smul.u32 %s32, 2
        %s550 = sadd.s32 %s549, %s33
        %p551 = scmp.lt.s32.totalorder %s550, 3
        %s552 = scalar_select %p551, %s550, 3
        %s553 = smul.u32 8, %s552
        %s554 = ssub.s32 25, %s553
        %p555 = scmp.lt.s32.totalorder %s554, 8
        %s556 = scalar_select %p555, %s554, 8
        %s557 = smul.u32 128, %s556
        %p558 = scmp.lt.s32.totalorder %s553, 24
        %s559 = scalar_select %p558, %s553, 24
        %s560 = smul.addr %s559, 8
        %s561 = scalar_lea.vmem %s3, %s560
        %p562 = pneg %p171
        %p563 = pneg %p168
        %s564 = smul.u32 %s32, 2
        %s565 = sadd.s32 %s564, %s33
        %p566 = scmp.lt.s32.totalorder %s565, 3
        %s567 = scalar_select %p566, %s565, 3
        %s568 = smul.u32 8, %s567
        %s569 = ssub.s32 25, %s568
        %p570 = scmp.lt.s32.totalorder %s569, 8
        %s571 = scalar_select %p570, %s569, 8
        %s572 = smul.u32 128, %s571
        %p573 = scmp.lt.s32.totalorder %s568, 24
        %s574 = scalar_select %p573, %s568, 24
        %s575 = smul.addr %s574, 8
        %s576 = scalar_lea.vmem %s4, %s575
        %p577 = pneg %p205
        %p578 = pneg %p202
        %p579 = pneg %p226
        %p580 = pneg %p223
        %p581 = pneg %p247
        %p582 = pneg %p244
        %p583 = pneg %p268
        %p584 = pneg %p265
        %p585 = pneg %p289
        %p586 = pneg %p286
        %p587 = pneg %p315
        %p588 = pneg %p312
        %s589 = sand.u32 %s302, 1
        %s590 = scalar_lea.sflag [#allocation5], %s589
        %s591 = sand.u32 %s302, 1
        %s592 = smul.addr %s591, 8
        %s593 = scalar_lea.vmem [#allocation4], %s592
        %p594 = pneg %p341
        %p595 = pneg %p338
        %s596 = sand.u32 %s328, 1
        %s597 = scalar_lea.sflag [#allocation7], %s596
        %s598 = sand.u32 %s328, 1
        %s599 = smul.addr %s598, 8
        %s600 = scalar_lea.vmem [#allocation6], %s599
        %s601 = smul.u32 %s32, 2
        %s602 = sadd.s32 %s601, %s33
        %p603 = scmp.lt.s32.totalorder %s602, 3
        %s604 = scalar_select %p603, %s602, 3
        %s605 = smul.u32 8, %s604
        %s606 = ssub.s32 25, %s605
        %p607 = scmp.lt.s32.totalorder %s606, 8
        %s608 = scalar_select %p607, %s606, 8
        %s609 = smul.u32 128, %s608
        %p610 = scmp.lt.s32.totalorder %s605, 24
        %s611 = scalar_select %p610, %s605, 24
        %s612 = smul.addr %s611, 8
        %s613 = scalar_lea.vmem %s0, %s612
        %s614 = smul.u32 %s32, 2
        %s615 = sadd.s32 %s614, %s33
        %p616 = scmp.lt.s32.totalorder %s615, 3
        %s617 = scalar_select %p616, %s615, 3
        %s618 = smul.u32 8, %s617
        %s619 = ssub.s32 25, %s618
        %p620 = scmp.lt.s32.totalorder %s619, 8
        %s621 = scalar_select %p620, %s619, 8
        %s622 = smul.u32 128, %s621
        %s623 = smul.u32 %s32, 2
        %s624 = sadd.s32 %s623, %s33
        %p625 = scmp.lt.s32.totalorder %s624, 3
        %s626 = scalar_select %p625, %s624, 3
        %s627 = smul.u32 8, %s626
        %s628 = ssub.s32 25, %s627
        %p629 = scmp.lt.s32.totalorder %s628, 8
        %s630 = scalar_select %p629, %s628, 8
        %s631 = smul.u32 128, %s630
        %p632 = scmp.lt.s32.totalorder %s627, 24
        %s633 = scalar_select %p632, %s627, 24
        %s634 = smul.addr %s633, 8
        %s635 = scalar_lea.vmem %s1, %s634
        %s636 = smul.u32 %s32, 2
        %s637 = sadd.s32 %s636, %s33
        %p638 = scmp.lt.s32.totalorder %s637, 3
        %s639 = scalar_select %p638, %s637, 3
        %s640 = smul.u32 8, %s639
        %s641 = ssub.s32 25, %s640
        %p642 = scmp.lt.s32.totalorder %s641, 8
        %s643 = scalar_select %p642, %s641, 8
        %s644 = smul.u32 128, %s643
        %s645 = smul.u32 %s32, 2
        %s646 = sadd.s32 %s645, %s33
        %p647 = scmp.lt.s32.totalorder %s646, 3
        %s648 = scalar_select %p647, %s646, 3
        %s649 = smul.u32 8, %s648
        %s650 = ssub.s32 25, %s649
        %p651 = scmp.lt.s32.totalorder %s650, 8
        %s652 = scalar_select %p651, %s650, 8
        %s653 = smul.u32 128, %s652
        %p654 = scmp.lt.s32.totalorder %s649, 24
        %s655 = scalar_select %p654, %s649, 24
        %s656 = smul.addr %s655, 8
        %s657 = scalar_lea.vmem %s2, %s656
        %s658 = smul.u32 %s32, 2
        %s659 = sadd.s32 %s658, %s33
        %p660 = scmp.lt.s32.totalorder %s659, 3
        %s661 = scalar_select %p660, %s659, 3
        %s662 = smul.u32 8, %s661
        %s663 = ssub.s32 25, %s662
        %p664 = scmp.lt.s32.totalorder %s663, 8
        %s665 = scalar_select %p664, %s663, 8
        %s666 = smul.u32 128, %s665
        %s667 = smul.u32 %s32, 2
        %s668 = sadd.s32 %s667, %s33
        %p669 = scmp.lt.s32.totalorder %s668, 3
        %s670 = scalar_select %p669, %s668, 3
        %s671 = smul.u32 8, %s670
        %s672 = ssub.s32 25, %s671
        %p673 = scmp.lt.s32.totalorder %s672, 8
        %s674 = scalar_select %p673, %s672, 8
        %s675 = smul.u32 128, %s674
        %p676 = scmp.lt.s32.totalorder %s671, 24
        %s677 = scalar_select %p676, %s671, 24
        %s678 = smul.addr %s677, 8
        %s679 = scalar_lea.vmem %s3, %s678
        %s680 = smul.u32 %s32, 2
        %s681 = sadd.s32 %s680, %s33
        %p682 = scmp.lt.s32.totalorder %s681, 3
        %s683 = scalar_select %p682, %s681, 3
        %s684 = smul.u32 8, %s683
        %s685 = ssub.s32 25, %s684
        %p686 = scmp.lt.s32.totalorder %s685, 8
        %s687 = scalar_select %p686, %s685, 8
        %s688 = smul.u32 128, %s687
        %s689 = smul.u32 %s32, 2
        %s690 = sadd.s32 %s689, %s33
        %p691 = scmp.lt.s32.totalorder %s690, 3
        %s692 = scalar_select %p691, %s690, 3
        %s693 = smul.u32 8, %s692
        %s694 = ssub.s32 25, %s693
        %p695 = scmp.lt.s32.totalorder %s694, 8
        %s696 = scalar_select %p695, %s694, 8
        %s697 = smul.u32 128, %s696
        %p698 = scmp.lt.s32.totalorder %s693, 24
        %s699 = scalar_select %p698, %s693, 24
        %s700 = smul.addr %s699, 8
        %s701 = scalar_lea.vmem %s4, %s700
        %s702 = smul.u32 %s32, 2
        %s703 = sadd.s32 %s702, %s33
        %p704 = scmp.lt.s32.totalorder %s703, 3
        %s705 = scalar_select %p704, %s703, 3
        %s706 = smul.u32 8, %s705
        %s707 = ssub.s32 25, %s706
        %p708 = scmp.lt.s32.totalorder %s707, 8
        %s709 = scalar_select %p708, %s707, 8
        %s710 = smul.u32 128, %s709
        %p711 = scmp.eq.s32.totalorder %s33, 0
        // Predicated region
        $region57: #{tpu_custom_call.1} parent=55 // pred_check
          %p712 = pneg %p711
        $region58: #{tpu_custom_call.1} parent=55 // pred_check_branch
          %714 = sbr.rel (%p712) target = $region60
        $region59: #{tpu_custom_call.1} parent=55 // pred_region
          %vm715 = vcmask 7168
          %716 = vst.msk [vmem:[#allocation2] sm:$0xff] %vm715, 0.0
          %717 = vst.msk [vmem:[#allocation2 + $0x8] sm:$0xff] %vm715, 0.0
          %718 = vst.msk [vmem:[#allocation2 + $0x10] sm:$0xff] %vm715, 0.0
          %719 = vst.msk [vmem:[#allocation2 + $0x18] sm:$0xff] %vm715, 0.0
          %720 = vst.msk [vmem:[#allocation2 + $0x20] sm:$0xff] %vm715, 0.0
          %721 = vst.msk [vmem:[#allocation2 + $0x28] sm:$0xff] %vm715, 0.0
          %722 = vst.msk [vmem:[#allocation2 + $0x30] sm:$0xff] %vm715, 0.0
          %723 = vst.msk [vmem:[#allocation2 + $0x38] sm:$0xff] %vm715, 0.0
          %724 = vst.msk [vmem:[#allocation3] sm:$0xff] %vm715, 0.0
          %725 = vst.msk [vmem:[#allocation3 + $0x8] sm:$0xff] %vm715, 0.0
          %726 = vst.msk [vmem:[#allocation3 + $0x10] sm:$0xff] %vm715, 0.0
          %727 = vst.msk [vmem:[#allocation3 + $0x18] sm:$0xff] %vm715, 0.0
          %728 = vst.msk [vmem:[#allocation3 + $0x20] sm:$0xff] %vm715, 0.0
          %729 = vst.msk [vmem:[#allocation3 + $0x28] sm:$0xff] %vm715, 0.0
          %730 = vst.msk [vmem:[#allocation3 + $0x30] sm:$0xff] %vm715, 0.0
          %731 = vst.msk [vmem:[#allocation3 + $0x38] sm:$0xff] %vm715, 0.0
        $region60: #{tpu_custom_call.1} parent=55 // pred_fallthru
          _
        %s732 = smul.u32 %s32, 2
        %s733 = sadd.s32 %s732, %s33
        %s734 = smul.u32 %s733, 64
        %v735 = vlaneseq
        %v736 = vshrl.u32 %v735, 7
        %v737 = vadd.s32 %v736, 8
        %v738 = vadd.s32 %v736, 16
        %v739 = vadd.s32 %v736, 24
        %v740 = vadd.s32 %v736, 32
        %v741 = vadd.s32 %v736, 40
        %v742 = vadd.s32 %v736, 48
        %v743 = vadd.s32 %v736, 56
        %v744 = vstv %s734
        %v745 = vadd.s32 %v744, %v736
        %v746 = vadd.s32 %v744, %v737
        %v747 = vadd.s32 %v744, %v738
        %v748 = vadd.s32 %v744, %v739
        %v749 = vadd.s32 %v744, %v740
        %v750 = vadd.s32 %v744, %v741
        %v751 = vadd.s32 %v744, %v742
        %v752 = vadd.s32 %v744, %v743
        %vm753 = vcmp.lt.s32.totalorder %v745, 200
        %vm754 = vcmp.lt.s32.totalorder %v746, 200
        %vm755 = vcmp.lt.s32.totalorder %v747, 200
        %vm756 = vcmp.lt.s32.totalorder %v748, 200
        %vm757 = vcmp.lt.s32.totalorder %v749, 200
        %vm758 = vcmp.lt.s32.totalorder %v750, 200
        %vm759 = vcmp.lt.s32.totalorder %v751, 200
        %vm760 = vcmp.lt.s32.totalorder %v752, 200
        %v761 = vld [vmem:[%s613] sm:$0xff]
        %v762 = vld [vmem:[%s613 + $0x8] sm:$0xff]
        %v763 = vld [vmem:[%s613 + $0x10] sm:$0xff]
        %v764 = vld [vmem:[%s613 + $0x18] sm:$0xff]
        %v765 = vld [vmem:[%s613 + $0x20] sm:$0xff]
        %v766 = vld [vmem:[%s613 + $0x28] sm:$0xff]
        %v767 = vld [vmem:[%s613 + $0x30] sm:$0xff]
        %v768 = vld [vmem:[%s613 + $0x38] sm:$0xff]
        %v769 = vld [vmem:[%s5] sm:$0xff]
        %v770 = vld [vmem:[%s5 + $0x8] sm:$0xff]
        %v771 = vld [vmem:[%s5 + $0x10] sm:$0xff]
        %v772 = vld [vmem:[%s5 + $0x18] sm:$0xff]
        %v773 = vld [vmem:[%s6] sm:$0x1]
        %v775 = vlaneseq
        %v776 = vshrl.u32 %v775, 7
        %v777 = vsub.s32 0, %v776
        %v778 = vrot.slane %v773, %v777
        %vm780 = vcmask 261120
        %v782 = vsel %vm780, %v761, 0
        %v785 = vsel %vm780, %v762, 0
        %v788 = vsel %vm780, %v763, 0
        %v791 = vsel %vm780, %v764, 0
        %v794 = vsel %vm780, %v765, 0
        %v797 = vsel %vm780, %v766, 0
        %v800 = vsel %vm780, %v767, 0
        %v803 = vsel %vm780, %v768, 0
        %805 = vmatprep.subr.mxu0 0.0
        %806 = vmatpush1.msra.mxu0 0.0
        %807 = vmatprep.subr.mxu0 0.0
        %808 = vmatpush1.msra.mxu0 0.0
        %809 = vmatprep.subr.mxu0 0.0
        %810 = vmatpush1.msra.mxu0 0.0
        %811 = vmatprep.subr.mxu0 0.0
        %812 = vmatpush1.msra.mxu0 0.0
        %813 = vmatprep.subr.mxu0 0.0
        %814 = vmatpush1.msra.mxu0 0.0
        %815 = vmatprep.subr.mxu0 0.0
        %816 = vmatpush1.msra.mxu0 0.0
        %817 = vmatprep.subr.mxu0 0.0
        %818 = vmatpush1.msra.mxu0 0.0
        %819 = vmatprep.subr.mxu0 0.0
        %820 = vmatpush1.msra.mxu0 0.0
        %821 = vmatprep.subr.mxu0 0.0
        %822 = vmatpush1.msra.mxu0 0.0
        %823 = vmatprep.subr.mxu0 0.0
        %824 = vmatpush1.msra.mxu0 0.0
        %825 = vmatprep.subr.mxu0 0.0
        %826 = vmatpush1.msra.mxu0 0.0
        %827 = vmatprep.subr.mxu0 0.0
        %828 = vmatpush1.msra.mxu0 0.0
        %829 = vmatprep.subr.mxu0 0.0
        %830 = vmatpush1.msra.mxu0 %v772
        %831 = vmatprep.subr.mxu0 0.0
        %832 = vmatpush1.msra.mxu0 %v771
        %833 = vmatprep.subr.mxu0 0.0
        %834 = vmatpush1.msra.mxu0 %v770
        %835 = vmatprep.subr.mxu0 0.0
        %836 = vmatpush1.msra.mxu0 %v769
        %837 = vmatprep.subr.mxu0 0.0
        %838 = vmatpush2.msra.mxu0 0.0
        %839 = vmatprep.subr.mxu0 0.0
        %840 = vmatpush2.msra.mxu0 0.0
        %841 = vmatprep.subr.mxu0 0.0
        %842 = vmatpush2.msra.mxu0 0.0
        %843 = vmatprep.subr.mxu0 0.0
        %844 = vmatpush2.msra.mxu0 0.0
        %845 = vmatprep.subr.mxu0 0.0
        %846 = vmatpush2.msra.mxu0 0.0
        %847 = vmatprep.subr.mxu0 0.0
        %848 = vmatpush2.msra.mxu0 0.0
        %849 = vmatprep.subr.mxu0 0.0
        %850 = vmatpush2.msra.mxu0 0.0
        %851 = vmatprep.subr.mxu0 0.0
        %852 = vmatpush2.msra.mxu0 0.0
        %853 = vmatprep.subr.mxu0 0.0
        %854 = vmatpush2.msra.mxu0 0.0
        %855 = vmatprep.subr.mxu0 0.0
        %856 = vmatpush2.msra.mxu0 0.0
        %857 = vmatprep.subr.mxu0 0.0
        %858 = vmatpush2.msra.mxu0 0.0
        %859 = vmatprep.subr.mxu0 0.0
        %860 = vmatpush2.msra.mxu0 0.0
        %861 = vmatprep.subr.mxu0 0.0
        %862 = vmatpush2.msra.mxu0 0.0
        %863 = vmatprep.subr.mxu0 0.0
        %864 = vmatpush2.msra.mxu0 0.0
        %865 = vmatprep.subr.mxu0 0.0
        %866 = vmatpush2.msra.mxu0 0.0
        %867 = vmatprep.subr.mxu0 0.0
        %868 = vmatpush2.msra.mxu0 0.0
        %869 = vmatprep.mubr.f32.mxu0 0.0
        %870 = vmatmul.mubr.f32.gmra.mxu0 %v782
        %v871 = vpop.f32.mrf.mxu0
        %v872 = vadd.f32 %v778, %v871
        %v873 = vpop.f32.mrf.mxu0
        %874 = vmatprep.mubr.f32.mxu0 0.0
        %875 = vmatmul.mubr.f32.gmra.mxu0 %v785
        %v876 = vpop.f32.mrf.mxu0
        %v877 = vadd.f32 %v778, %v876
        %v878 = vpop.f32.mrf.mxu0
        %879 = vmatprep.mubr.f32.mxu0 0.0
        %880 = vmatmul.mubr.f32.gmra.mxu0 %v788
        %v881 = vpop.f32.mrf.mxu0
        %v882 = vadd.f32 %v778, %v881
        %v883 = vpop.f32.mrf.mxu0
        %884 = vmatprep.mubr.f32.mxu0 0.0
        %885 = vmatmul.mubr.f32.gmra.mxu0 %v791
        %v886 = vpop.f32.mrf.mxu0
        %v887 = vadd.f32 %v778, %v886
        %v888 = vpop.f32.mrf.mxu0
        %889 = vmatprep.mubr.f32.mxu0 0.0
        %890 = vmatmul.mubr.f32.gmra.mxu0 %v794
        %v891 = vpop.f32.mrf.mxu0
        %v892 = vadd.f32 %v778, %v891
        %v893 = vpop.f32.mrf.mxu0
        %894 = vmatprep.mubr.f32.mxu0 0.0
        %895 = vmatmul.mubr.f32.gmra.mxu0 %v797
        %v896 = vpop.f32.mrf.mxu0
        %v897 = vadd.f32 %v778, %v896
        %v898 = vpop.f32.mrf.mxu0
        %899 = vmatprep.mubr.f32.mxu0 0.0
        %900 = vmatmul.mubr.f32.gmra.mxu0 %v800
        %v901 = vpop.f32.mrf.mxu0
        %v902 = vadd.f32 %v778, %v901
        %v903 = vpop.f32.mrf.mxu0
        %904 = vmatprep.mubr.f32.mxu0 0.0
        %905 = vmatmul.mubr.f32.gmra.mxu0 %v803
        %v906 = vpop.f32.mrf.mxu0
        %v907 = vadd.f32 %v778, %v906
        %v908 = vpop.f32.mrf.mxu0
        %909 = vdwg.mxu0
        %v910 = vmax.f32 %v872, 0.0
        %v911 = vmax.f32 %v877, 0.0
        %v912 = vmax.f32 %v882, 0.0
        %v913 = vmax.f32 %v887, 0.0
        %v914 = vmax.f32 %v892, 0.0
        %v915 = vmax.f32 %v897, 0.0
        %v916 = vmax.f32 %v902, 0.0
        %v917 = vmax.f32 %v907, 0.0
        %v918 = vld [vmem:[%s7] sm:$0xff]
        %v919 = vld [vmem:[%s7 + $0x8] sm:$0xff]
        %v920 = vld [vmem:[%s7 + $0x10] sm:$0xff]
        %v921 = vld [vmem:[%s7 + $0x18] sm:$0xff]
        %v922 = vld [vmem:[%s7 + $0x20] sm:$0xff]
        %v923 = vld [vmem:[%s7 + $0x28] sm:$0xff]
        %v924 = vld [vmem:[%s7 + $0x30] sm:$0xff]
        %v925 = vld [vmem:[%s7 + $0x38] sm:$0xff]
        %v926 = vld [vmem:[%s8] sm:$0x1]
        %v928 = vlaneseq
        %v929 = vshrl.u32 %v928, 7
        %v930 = vsub.s32 0, %v929
        %v931 = vrot.slane %v926, %v930
        %vm933 = vcmask 523264
        %v935 = vsel %vm933, %v910, 0
        %v938 = vsel %vm933, %v911, 0
        %v941 = vsel %vm933, %v912, 0
        %v944 = vsel %vm933, %v913, 0
        %v947 = vsel %vm933, %v914, 0
        %v950 = vsel %vm933, %v915, 0
        %v953 = vsel %vm933, %v916, 0
        %v956 = vsel %vm933, %v917, 0
        %958 = vmatprep.subr.mxu0 0.0
        %959 = vmatpush1.msra.mxu0 0.0
        %960 = vmatprep.subr.mxu0 0.0
        %961 = vmatpush1.msra.mxu0 0.0
        %962 = vmatprep.subr.mxu0 0.0
        %963 = vmatpush1.msra.mxu0 0.0
        %964 = vmatprep.subr.mxu0 0.0
        %965 = vmatpush1.msra.mxu0 0.0
        %966 = vmatprep.subr.mxu0 0.0
        %967 = vmatpush1.msra.mxu0 0.0
        %968 = vmatprep.subr.mxu0 0.0
        %969 = vmatpush1.msra.mxu0 0.0
        %970 = vmatprep.subr.mxu0 0.0
        %971 = vmatpush1.msra.mxu0 0.0
        %972 = vmatprep.subr.mxu0 0.0
        %973 = vmatpush1.msra.mxu0 0.0
        %974 = vmatprep.subr.mxu0 0.0
        %975 = vmatpush1.msra.mxu0 %v925
        %976 = vmatprep.subr.mxu0 0.0
        %977 = vmatpush1.msra.mxu0 %v924
        %978 = vmatprep.subr.mxu0 0.0
        %979 = vmatpush1.msra.mxu0 %v923
        %980 = vmatprep.subr.mxu0 0.0
        %981 = vmatpush1.msra.mxu0 %v922
        %982 = vmatprep.subr.mxu0 0.0
        %983 = vmatpush1.msra.mxu0 %v921
        %984 = vmatprep.subr.mxu0 0.0
        %985 = vmatpush1.msra.mxu0 %v920
        %986 = vmatprep.subr.mxu0 0.0
        %987 = vmatpush1.msra.mxu0 %v919
        %988 = vmatprep.subr.mxu0 0.0
        %989 = vmatpush1.msra.mxu0 %v918
        %990 = vmatprep.subr.mxu0 0.0
        %991 = vmatpush2.msra.mxu0 0.0
        %992 = vmatprep.subr.mxu0 0.0
        %993 = vmatpush2.msra.mxu0 0.0
        %994 = vmatprep.subr.mxu0 0.0
        %995 = vmatpush2.msra.mxu0 0.0
        %996 = vmatprep.subr.mxu0 0.0
        %997 = vmatpush2.msra.mxu0 0.0
        %998 = vmatprep.subr.mxu0 0.0
        %999 = vmatpush2.msra.mxu0 0.0
        %1000 = vmatprep.subr.mxu0 0.0
        %1001 = vmatpush2.msra.mxu0 0.0
        %1002 = vmatprep.subr.mxu0 0.0
        %1003 = vmatpush2.msra.mxu0 0.0
        %1004 = vmatprep.subr.mxu0 0.0
        %1005 = vmatpush2.msra.mxu0 0.0
        %1006 = vmatprep.subr.mxu0 0.0
        %1007 = vmatpush2.msra.mxu0 0.0
        %1008 = vmatprep.subr.mxu0 0.0
        %1009 = vmatpush2.msra.mxu0 0.0
        %1010 = vmatprep.subr.mxu0 0.0
        %1011 = vmatpush2.msra.mxu0 0.0
        %1012 = vmatprep.subr.mxu0 0.0
        %1013 = vmatpush2.msra.mxu0 0.0
        %1014 = vmatprep.subr.mxu0 0.0
        %1015 = vmatpush2.msra.mxu0 0.0
        %1016 = vmatprep.subr.mxu0 0.0
        %1017 = vmatpush2.msra.mxu0 0.0
        %1018 = vmatprep.subr.mxu0 0.0
        %1019 = vmatpush2.msra.mxu0 0.0
        %1020 = vmatprep.subr.mxu0 0.0
        %1021 = vmatpush2.msra.mxu0 0.0
        %1022 = vmatprep.mubr.f32.mxu0 0.0
        %1023 = vmatmul.mubr.f32.gmra.mxu0 %v935
        %v1024 = vpop.f32.mrf.mxu0
        %v1025 = vadd.f32 %v931, %v1024
        %v1026 = vpop.f32.mrf.mxu0
        %1027 = vmatprep.mubr.f32.mxu0 0.0
        %1028 = vmatmul.mubr.f32.gmra.mxu0 %v938
        %v1029 = vpop.f32.mrf.mxu0
        %v1030 = vadd.f32 %v931, %v1029
        %v1031 = vpop.f32.mrf.mxu0
        %1032 = vmatprep.mubr.f32.mxu0 0.0
        %1033 = vmatmul.mubr.f32.gmra.mxu0 %v941
        %v1034 = vpop.f32.mrf.mxu0
        %v1035 = vadd.f32 %v931, %v1034
        %v1036 = vpop.f32.mrf.mxu0
        %1037 = vmatprep.mubr.f32.mxu0 0.0
        %1038 = vmatmul.mubr.f32.gmra.mxu0 %v944
        %v1039 = vpop.f32.mrf.mxu0
        %v1040 = vadd.f32 %v931, %v1039
        %v1041 = vpop.f32.mrf.mxu0
        %1042 = vmatprep.mubr.f32.mxu0 0.0
        %1043 = vmatmul.mubr.f32.gmra.mxu0 %v947
        %v1044 = vpop.f32.mrf.mxu0
        %v1045 = vadd.f32 %v931, %v1044
        %v1046 = vpop.f32.mrf.mxu0
        %1047 = vmatprep.mubr.f32.mxu0 0.0
        %1048 = vmatmul.mubr.f32.gmra.mxu0 %v950
        %v1049 = vpop.f32.mrf.mxu0
        %v1050 = vadd.f32 %v931, %v1049
        %v1051 = vpop.f32.mrf.mxu0
        %1052 = vmatprep.mubr.f32.mxu0 0.0
        %1053 = vmatmul.mubr.f32.gmra.mxu0 %v953
        %v1054 = vpop.f32.mrf.mxu0
        %v1055 = vadd.f32 %v931, %v1054
        %v1056 = vpop.f32.mrf.mxu0
        %1057 = vmatprep.mubr.f32.mxu0 0.0
        %1058 = vmatmul.mubr.f32.gmra.mxu0 %v956
        %v1059 = vpop.f32.mrf.mxu0
        %v1060 = vadd.f32 %v931, %v1059
        %v1061 = vpop.f32.mrf.mxu0
        %1062 = vdwg.mxu0
        %v1063 = vld [vmem:[%s635] sm:$0xff]
        %v1064 = vld [vmem:[%s635 + $0x8] sm:$0xff]
        %v1065 = vld [vmem:[%s635 + $0x10] sm:$0xff]
        %v1066 = vld [vmem:[%s635 + $0x18] sm:$0xff]
        %v1067 = vld [vmem:[%s635 + $0x20] sm:$0xff]
        %v1068 = vld [vmem:[%s635 + $0x28] sm:$0xff]
        %v1069 = vld [vmem:[%s635 + $0x30] sm:$0xff]
        %v1070 = vld [vmem:[%s635 + $0x38] sm:$0xff]
        %v1072 = vsel %vm780, %v1063, 0
        %v1075 = vsel %vm780, %v1064, 0
        %v1078 = vsel %vm780, %v1065, 0
        %v1081 = vsel %vm780, %v1066, 0
        %v1084 = vsel %vm780, %v1067, 0
        %v1087 = vsel %vm780, %v1068, 0
        %v1090 = vsel %vm780, %v1069, 0
        %v1093 = vsel %vm780, %v1070, 0
        %1095 = vmatprep.subr.mxu0 0.0
        %1096 = vmatpush1.msra.mxu0 0.0
        %1097 = vmatprep.subr.mxu0 0.0
        %1098 = vmatpush1.msra.mxu0 0.0
        %1099 = vmatprep.subr.mxu0 0.0
        %1100 = vmatpush1.msra.mxu0 0.0
        %1101 = vmatprep.subr.mxu0 0.0
        %1102 = vmatpush1.msra.mxu0 0.0
        %1103 = vmatprep.subr.mxu0 0.0
        %1104 = vmatpush1.msra.mxu0 0.0
        %1105 = vmatprep.subr.mxu0 0.0
        %1106 = vmatpush1.msra.mxu0 0.0
        %1107 = vmatprep.subr.mxu0 0.0
        %1108 = vmatpush1.msra.mxu0 0.0
        %1109 = vmatprep.subr.mxu0 0.0
        %1110 = vmatpush1.msra.mxu0 0.0
        %1111 = vmatprep.subr.mxu0 0.0
        %1112 = vmatpush1.msra.mxu0 0.0
        %1113 = vmatprep.subr.mxu0 0.0
        %1114 = vmatpush1.msra.mxu0 0.0
        %1115 = vmatprep.subr.mxu0 0.0
        %1116 = vmatpush1.msra.mxu0 0.0
        %1117 = vmatprep.subr.mxu0 0.0
        %1118 = vmatpush1.msra.mxu0 0.0
        %1119 = vmatprep.subr.mxu0 0.0
        %1120 = vmatpush1.msra.mxu0 %v772
        %1121 = vmatprep.subr.mxu0 0.0
        %1122 = vmatpush1.msra.mxu0 %v771
        %1123 = vmatprep.subr.mxu0 0.0
        %1124 = vmatpush1.msra.mxu0 %v770
        %1125 = vmatprep.subr.mxu0 0.0
        %1126 = vmatpush1.msra.mxu0 %v769
        %1127 = vmatprep.subr.mxu0 0.0
        %1128 = vmatpush2.msra.mxu0 0.0
        %1129 = vmatprep.subr.mxu0 0.0
        %1130 = vmatpush2.msra.mxu0 0.0
        %1131 = vmatprep.subr.mxu0 0.0
        %1132 = vmatpush2.msra.mxu0 0.0
        %1133 = vmatprep.subr.mxu0 0.0
        %1134 = vmatpush2.msra.mxu0 0.0
        %1135 = vmatprep.subr.mxu0 0.0
        %1136 = vmatpush2.msra.mxu0 0.0
        %1137 = vmatprep.subr.mxu0 0.0
        %1138 = vmatpush2.msra.mxu0 0.0
        %1139 = vmatprep.subr.mxu0 0.0
        %1140 = vmatpush2.msra.mxu0 0.0
        %1141 = vmatprep.subr.mxu0 0.0
        %1142 = vmatpush2.msra.mxu0 0.0
        %1143 = vmatprep.subr.mxu0 0.0
        %1144 = vmatpush2.msra.mxu0 0.0
        %1145 = vmatprep.subr.mxu0 0.0
        %1146 = vmatpush2.msra.mxu0 0.0
        %1147 = vmatprep.subr.mxu0 0.0
        %1148 = vmatpush2.msra.mxu0 0.0
        %1149 = vmatprep.subr.mxu0 0.0
        %1150 = vmatpush2.msra.mxu0 0.0
        %1151 = vmatprep.subr.mxu0 0.0
        %1152 = vmatpush2.msra.mxu0 0.0
        %1153 = vmatprep.subr.mxu0 0.0
        %1154 = vmatpush2.msra.mxu0 0.0
        %1155 = vmatprep.subr.mxu0 0.0
        %1156 = vmatpush2.msra.mxu0 0.0
        %1157 = vmatprep.subr.mxu0 0.0
        %1158 = vmatpush2.msra.mxu0 0.0
        %1159 = vmatprep.mubr.f32.mxu0 0.0
        %1160 = vmatmul.mubr.f32.gmra.mxu0 %v1072
        %v1161 = vpop.f32.mrf.mxu0
        %v1162 = vadd.f32 %v778, %v1161
        %v1163 = vpop.f32.mrf.mxu0
        %1164 = vmatprep.mubr.f32.mxu0 0.0
        %1165 = vmatmul.mubr.f32.gmra.mxu0 %v1075
        %v1166 = vpop.f32.mrf.mxu0
        %v1167 = vadd.f32 %v778, %v1166
        %v1168 = vpop.f32.mrf.mxu0
        %1169 = vmatprep.mubr.f32.mxu0 0.0
        %1170 = vmatmul.mubr.f32.gmra.mxu0 %v1078
        %v1171 = vpop.f32.mrf.mxu0
        %v1172 = vadd.f32 %v778, %v1171
        %v1173 = vpop.f32.mrf.mxu0
        %1174 = vmatprep.mubr.f32.mxu0 0.0
        %1175 = vmatmul.mubr.f32.gmra.mxu0 %v1081
        %v1176 = vpop.f32.mrf.mxu0
        %v1177 = vadd.f32 %v778, %v1176
        %v1178 = vpop.f32.mrf.mxu0
        %1179 = vmatprep.mubr.f32.mxu0 0.0
        %1180 = vmatmul.mubr.f32.gmra.mxu0 %v1084
        %v1181 = vpop.f32.mrf.mxu0
        %v1182 = vadd.f32 %v778, %v1181
        %v1183 = vpop.f32.mrf.mxu0
        %1184 = vmatprep.mubr.f32.mxu0 0.0
        %1185 = vmatmul.mubr.f32.gmra.mxu0 %v1087
        %v1186 = vpop.f32.mrf.mxu0
        %v1187 = vadd.f32 %v778, %v1186
        %v1188 = vpop.f32.mrf.mxu0
        %1189 = vmatprep.mubr.f32.mxu0 0.0
        %1190 = vmatmul.mubr.f32.gmra.mxu0 %v1090
        %v1191 = vpop.f32.mrf.mxu0
        %v1192 = vadd.f32 %v778, %v1191
        %v1193 = vpop.f32.mrf.mxu0
        %1194 = vmatprep.mubr.f32.mxu0 0.0
        %1195 = vmatmul.mubr.f32.gmra.mxu0 %v1093
        %v1196 = vpop.f32.mrf.mxu0
        %v1197 = vadd.f32 %v778, %v1196
        %v1198 = vpop.f32.mrf.mxu0
        %1199 = vdwg.mxu0
        %v1200 = vmax.f32 %v1162, 0.0
        %v1201 = vmax.f32 %v1167, 0.0
        %v1202 = vmax.f32 %v1172, 0.0
        %v1203 = vmax.f32 %v1177, 0.0
        %v1204 = vmax.f32 %v1182, 0.0
        %v1205 = vmax.f32 %v1187, 0.0
        %v1206 = vmax.f32 %v1192, 0.0
        %v1207 = vmax.f32 %v1197, 0.0
        %v1209 = vsel %vm933, %v1200, 0
        %v1212 = vsel %vm933, %v1201, 0
        %v1215 = vsel %vm933, %v1202, 0
        %v1218 = vsel %vm933, %v1203, 0
        %v1221 = vsel %vm933, %v1204, 0
        %v1224 = vsel %vm933, %v1205, 0
        %v1227 = vsel %vm933, %v1206, 0
        %v1230 = vsel %vm933, %v1207, 0
        %1232 = vmatprep.subr.mxu0 0.0
        %1233 = vmatpush1.msra.mxu0 0.0
        %1234 = vmatprep.subr.mxu0 0.0
        %1235 = vmatpush1.msra.mxu0 0.0
        %1236 = vmatprep.subr.mxu0 0.0
        %1237 = vmatpush1.msra.mxu0 0.0
        %1238 = vmatprep.subr.mxu0 0.0
        %1239 = vmatpush1.msra.mxu0 0.0
        %1240 = vmatprep.subr.mxu0 0.0
        %1241 = vmatpush1.msra.mxu0 0.0
        %1242 = vmatprep.subr.mxu0 0.0
        %1243 = vmatpush1.msra.mxu0 0.0
        %1244 = vmatprep.subr.mxu0 0.0
        %1245 = vmatpush1.msra.mxu0 0.0
        %1246 = vmatprep.subr.mxu0 0.0
        %1247 = vmatpush1.msra.mxu0 0.0
        %1248 = vmatprep.subr.mxu0 0.0
        %1249 = vmatpush1.msra.mxu0 %v925
        %1250 = vmatprep.subr.mxu0 0.0
        %1251 = vmatpush1.msra.mxu0 %v924
        %1252 = vmatprep.subr.mxu0 0.0
        %1253 = vmatpush1.msra.mxu0 %v923
        %1254 = vmatprep.subr.mxu0 0.0
        %1255 = vmatpush1.msra.mxu0 %v922
        %1256 = vmatprep.subr.mxu0 0.0
        %1257 = vmatpush1.msra.mxu0 %v921
        %1258 = vmatprep.subr.mxu0 0.0
        %1259 = vmatpush1.msra.mxu0 %v920
        %1260 = vmatprep.subr.mxu0 0.0
        %1261 = vmatpush1.msra.mxu0 %v919
        %1262 = vmatprep.subr.mxu0 0.0
        %1263 = vmatpush1.msra.mxu0 %v918
        %1264 = vmatprep.subr.mxu0 0.0
        %1265 = vmatpush2.msra.mxu0 0.0
        %1266 = vmatprep.subr.mxu0 0.0
        %1267 = vmatpush2.msra.mxu0 0.0
        %1268 = vmatprep.subr.mxu0 0.0
        %1269 = vmatpush2.msra.mxu0 0.0
        %1270 = vmatprep.subr.mxu0 0.0
        %1271 = vmatpush2.msra.mxu0 0.0
        %1272 = vmatprep.subr.mxu0 0.0
        %1273 = vmatpush2.msra.mxu0 0.0
        %1274 = vmatprep.subr.mxu0 0.0
        %1275 = vmatpush2.msra.mxu0 0.0
        %1276 = vmatprep.subr.mxu0 0.0
        %1277 = vmatpush2.msra.mxu0 0.0
        %1278 = vmatprep.subr.mxu0 0.0
        %1279 = vmatpush2.msra.mxu0 0.0
        %1280 = vmatprep.subr.mxu0 0.0
        %1281 = vmatpush2.msra.mxu0 0.0
        %1282 = vmatprep.subr.mxu0 0.0
        %1283 = vmatpush2.msra.mxu0 0.0
        %1284 = vmatprep.subr.mxu0 0.0
        %1285 = vmatpush2.msra.mxu0 0.0
        %1286 = vmatprep.subr.mxu0 0.0
        %1287 = vmatpush2.msra.mxu0 0.0
        %1288 = vmatprep.subr.mxu0 0.0
        %1289 = vmatpush2.msra.mxu0 0.0
        %1290 = vmatprep.subr.mxu0 0.0
        %1291 = vmatpush2.msra.mxu0 0.0
        %1292 = vmatprep.subr.mxu0 0.0
        %1293 = vmatpush2.msra.mxu0 0.0
        %1294 = vmatprep.subr.mxu0 0.0
        %1295 = vmatpush2.msra.mxu0 0.0
        %1296 = vmatprep.mubr.f32.mxu0 0.0
        %1297 = vmatmul.mubr.f32.gmra.mxu0 %v1209
        %v1298 = vpop.f32.mrf.mxu0
        %v1299 = vadd.f32 %v931, %v1298
        %v1300 = vpop.f32.mrf.mxu0
        %1301 = vmatprep.mubr.f32.mxu0 0.0
        %1302 = vmatmul.mubr.f32.gmra.mxu0 %v1212
        %v1303 = vpop.f32.mrf.mxu0
        %v1304 = vadd.f32 %v931, %v1303
        %v1305 = vpop.f32.mrf.mxu0
        %1306 = vmatprep.mubr.f32.mxu0 0.0
        %1307 = vmatmul.mubr.f32.gmra.mxu0 %v1215
        %v1308 = vpop.f32.mrf.mxu0
        %v1309 = vadd.f32 %v931, %v1308
        %v1310 = vpop.f32.mrf.mxu0
        %1311 = vmatprep.mubr.f32.mxu0 0.0
        %1312 = vmatmul.mubr.f32.gmra.mxu0 %v1218
        %v1313 = vpop.f32.mrf.mxu0
        %v1314 = vadd.f32 %v931, %v1313
        %v1315 = vpop.f32.mrf.mxu0
        %1316 = vmatprep.mubr.f32.mxu0 0.0
        %1317 = vmatmul.mubr.f32.gmra.mxu0 %v1221
        %v1318 = vpop.f32.mrf.mxu0
        %v1319 = vadd.f32 %v931, %v1318
        %v1320 = vpop.f32.mrf.mxu0
        %1321 = vmatprep.mubr.f32.mxu0 0.0
        %1322 = vmatmul.mubr.f32.gmra.mxu0 %v1224
        %v1323 = vpop.f32.mrf.mxu0
        %v1324 = vadd.f32 %v931, %v1323
        %v1325 = vpop.f32.mrf.mxu0
        %1326 = vmatprep.mubr.f32.mxu0 0.0
        %1327 = vmatmul.mubr.f32.gmra.mxu0 %v1227
        %v1328 = vpop.f32.mrf.mxu0
        %v1329 = vadd.f32 %v931, %v1328
        %v1330 = vpop.f32.mrf.mxu0
        %1331 = vmatprep.mubr.f32.mxu0 0.0
        %1332 = vmatmul.mubr.f32.gmra.mxu0 %v1230
        %v1333 = vpop.f32.mrf.mxu0
        %v1334 = vadd.f32 %v931, %v1333
        %v1335 = vpop.f32.mrf.mxu0
        %1336 = vdwg.mxu0
        %v1337 = vld [vmem:[%s657] sm:$0xff]
        %v1338 = vld [vmem:[%s657 + $0x8] sm:$0xff]
        %v1339 = vld [vmem:[%s657 + $0x10] sm:$0xff]
        %v1340 = vld [vmem:[%s657 + $0x18] sm:$0xff]
        %v1341 = vld [vmem:[%s657 + $0x20] sm:$0xff]
        %v1342 = vld [vmem:[%s657 + $0x28] sm:$0xff]
        %v1343 = vld [vmem:[%s657 + $0x30] sm:$0xff]
        %v1344 = vld [vmem:[%s657 + $0x38] sm:$0xff]
        %v1345 = vld [vmem:[%s679] sm:$0xff]
        %v1346 = vld [vmem:[%s679 + $0x8] sm:$0xff]
        %v1347 = vld [vmem:[%s679 + $0x10] sm:$0xff]
        %v1348 = vld [vmem:[%s679 + $0x18] sm:$0xff]
        %v1349 = vld [vmem:[%s679 + $0x20] sm:$0xff]
        %v1350 = vld [vmem:[%s679 + $0x28] sm:$0xff]
        %v1351 = vld [vmem:[%s679 + $0x30] sm:$0xff]
        %v1352 = vld [vmem:[%s679 + $0x38] sm:$0xff]
        %v1353 = vld [vmem:[%s701] sm:$0xff]
        %v1354 = vld [vmem:[%s701 + $0x8] sm:$0xff]
        %v1355 = vld [vmem:[%s701 + $0x10] sm:$0xff]
        %v1356 = vld [vmem:[%s701 + $0x18] sm:$0xff]
        %v1357 = vld [vmem:[%s701 + $0x20] sm:$0xff]
        %v1358 = vld [vmem:[%s701 + $0x28] sm:$0xff]
        %v1359 = vld [vmem:[%s701 + $0x30] sm:$0xff]
        %v1360 = vld [vmem:[%s701 + $0x38] sm:$0xff]
        %v1361 = vmul.f32 %v1025, %v1025
        %v1362 = vmul.f32 %v1030, %v1030
        %v1363 = vmul.f32 %v1035, %v1035
        %v1364 = vmul.f32 %v1040, %v1040
        %v1365 = vmul.f32 %v1045, %v1045
        %v1366 = vmul.f32 %v1050, %v1050
        %v1367 = vmul.f32 %v1055, %v1055
        %v1368 = vmul.f32 %v1060, %v1060
        %v1369 = vsel %vm780, %v1361, 0.0
        %1370 = vadd.xlane.f32.xlu0 %v1369
        %v1371 = vpop.xlane.xlu0 %1370
        %v1372 = vsel %vm780, %v1362, 0.0
        %1373 = vadd.xlane.f32.xlu0 %v1372
        %v1374 = vpop.xlane.xlu0 %1373
        %v1375 = vsel %vm780, %v1363, 0.0
        %1376 = vadd.xlane.f32.xlu0 %v1375
        %v1377 = vpop.xlane.xlu0 %1376
        %v1378 = vsel %vm780, %v1364, 0.0
        %1379 = vadd.xlane.f32.xlu0 %v1378
        %v1380 = vpop.xlane.xlu0 %1379
        %v1381 = vsel %vm780, %v1365, 0.0
        %1382 = vadd.xlane.f32.xlu0 %v1381
        %v1383 = vpop.xlane.xlu0 %1382
        %v1384 = vsel %vm780, %v1366, 0.0
        %1385 = vadd.xlane.f32.xlu0 %v1384
        %v1386 = vpop.xlane.xlu0 %1385
        %v1387 = vsel %vm780, %v1367, 0.0
        %1388 = vadd.xlane.f32.xlu0 %v1387
        %v1389 = vpop.xlane.xlu0 %1388
        %v1390 = vsel %vm780, %v1368, 0.0
        %1391 = vadd.xlane.f32.xlu0 %v1390
        %v1392 = vpop.xlane.xlu0 %1391
        %v1393 = vrsqrt.pop %v1371
        %v1394 = vrsqrt.pop %v1374
        %v1395 = vrsqrt.pop %v1377
        %v1396 = vrsqrt.pop %v1380
        %v1397 = vrsqrt.pop %v1383
        %v1398 = vrsqrt.pop %v1386
        %v1399 = vrsqrt.pop %v1389
        %v1400 = vrsqrt.pop %v1392
        %v1401 = vmin.f32 %v1393, 1e+08
        %v1402 = vmin.f32 %v1394, 1e+08
        %v1403 = vmin.f32 %v1395, 1e+08
        %v1404 = vmin.f32 %v1396, 1e+08
        %v1405 = vmin.f32 %v1397, 1e+08
        %v1406 = vmin.f32 %v1398, 1e+08
        %v1407 = vmin.f32 %v1399, 1e+08
        %v1408 = vmin.f32 %v1400, 1e+08
        %v1409 = vmul.f32 %v1299, %v1299
        %v1410 = vmul.f32 %v1304, %v1304
        %v1411 = vmul.f32 %v1309, %v1309
        %v1412 = vmul.f32 %v1314, %v1314
        %v1413 = vmul.f32 %v1319, %v1319
        %v1414 = vmul.f32 %v1324, %v1324
        %v1415 = vmul.f32 %v1329, %v1329
        %v1416 = vmul.f32 %v1334, %v1334
        %v1417 = vsel %vm780, %v1409, 0.0
        %1418 = vadd.xlane.f32.xlu0 %v1417
        %v1419 = vpop.xlane.xlu0 %1418
        %v1420 = vsel %vm780, %v1410, 0.0
        %1421 = vadd.xlane.f32.xlu0 %v1420
        %v1422 = vpop.xlane.xlu0 %1421
        %v1423 = vsel %vm780, %v1411, 0.0
        %1424 = vadd.xlane.f32.xlu0 %v1423
        %v1425 = vpop.xlane.xlu0 %1424
        %v1426 = vsel %vm780, %v1412, 0.0
        %1427 = vadd.xlane.f32.xlu0 %v1426
        %v1428 = vpop.xlane.xlu0 %1427
        %v1429 = vsel %vm780, %v1413, 0.0
        %1430 = vadd.xlane.f32.xlu0 %v1429
        %v1431 = vpop.xlane.xlu0 %1430
        %v1432 = vsel %vm780, %v1414, 0.0
        %1433 = vadd.xlane.f32.xlu0 %v1432
        %v1434 = vpop.xlane.xlu0 %1433
        %v1435 = vsel %vm780, %v1415, 0.0
        %1436 = vadd.xlane.f32.xlu0 %v1435
        %v1437 = vpop.xlane.xlu0 %1436
        %v1438 = vsel %vm780, %v1416, 0.0
        %1439 = vadd.xlane.f32.xlu0 %v1438
        %v1440 = vpop.xlane.xlu0 %1439
        %v1441 = vrsqrt.pop %v1419
        %v1442 = vrsqrt.pop %v1422
        %v1443 = vrsqrt.pop %v1425
        %v1444 = vrsqrt.pop %v1428
        %v1445 = vrsqrt.pop %v1431
        %v1446 = vrsqrt.pop %v1434
        %v1447 = vrsqrt.pop %v1437
        %v1448 = vrsqrt.pop %v1440
        %v1449 = vmin.f32 %v1441, 1e+08
        %v1450 = vmin.f32 %v1442, 1e+08
        %v1451 = vmin.f32 %v1443, 1e+08
        %v1452 = vmin.f32 %v1444, 1e+08
        %v1453 = vmin.f32 %v1445, 1e+08
        %v1454 = vmin.f32 %v1446, 1e+08
        %v1455 = vmin.f32 %v1447, 1e+08
        %v1456 = vmin.f32 %v1448, 1e+08
        %v1457 = vmul.f32 %v1345, %v1345
        %v1458 = vmul.f32 %v1346, %v1346
        %v1459 = vmul.f32 %v1347, %v1347
        %v1460 = vmul.f32 %v1348, %v1348
        %v1461 = vmul.f32 %v1349, %v1349
        %v1462 = vmul.f32 %v1350, %v1350
        %v1463 = vmul.f32 %v1351, %v1351
        %v1464 = vmul.f32 %v1352, %v1352
        %v1465 = vsel %vm780, %v1457, 0.0
        %1466 = vadd.xlane.f32.xlu0 %v1465
        %v1467 = vpop.xlane.xlu0 %1466
        %v1468 = vsel %vm780, %v1458, 0.0
        %1469 = vadd.xlane.f32.xlu0 %v1468
        %v1470 = vpop.xlane.xlu0 %1469
        %v1471 = vsel %vm780, %v1459, 0.0
        %1472 = vadd.xlane.f32.xlu0 %v1471
        %v1473 = vpop.xlane.xlu0 %1472
        %v1474 = vsel %vm780, %v1460, 0.0
        %1475 = vadd.xlane.f32.xlu0 %v1474
        %v1476 = vpop.xlane.xlu0 %1475
        %v1477 = vsel %vm780, %v1461, 0.0
        %1478 = vadd.xlane.f32.xlu0 %v1477
        %v1479 = vpop.xlane.xlu0 %1478
        %v1480 = vsel %vm780, %v1462, 0.0
        %1481 = vadd.xlane.f32.xlu0 %v1480
        %v1482 = vpop.xlane.xlu0 %1481
        %v1483 = vsel %vm780, %v1463, 0.0
        %1484 = vadd.xlane.f32.xlu0 %v1483
        %v1485 = vpop.xlane.xlu0 %1484
        %v1486 = vsel %vm780, %v1464, 0.0
        %1487 = vadd.xlane.f32.xlu0 %v1486
        %v1488 = vpop.xlane.xlu0 %1487
        %v1489 = vrsqrt.pop %v1467
        %v1490 = vrsqrt.pop %v1470
        %v1491 = vrsqrt.pop %v1473
        %v1492 = vrsqrt.pop %v1476
        %v1493 = vrsqrt.pop %v1479
        %v1494 = vrsqrt.pop %v1482
        %v1495 = vrsqrt.pop %v1485
        %v1496 = vrsqrt.pop %v1488
        %v1497 = vmin.f32 %v1489, 1e+08
        %v1498 = vmin.f32 %v1490, 1e+08
        %v1499 = vmin.f32 %v1491, 1e+08
        %v1500 = vmin.f32 %v1492, 1e+08
        %v1501 = vmin.f32 %v1493, 1e+08
        %v1502 = vmin.f32 %v1494, 1e+08
        %v1503 = vmin.f32 %v1495, 1e+08
        %v1504 = vmin.f32 %v1496, 1e+08
        %v1505 = vmul.f32 %v1337, %v1337
        %v1506 = vmul.f32 %v1338, %v1338
        %v1507 = vmul.f32 %v1339, %v1339
        %v1508 = vmul.f32 %v1340, %v1340
        %v1509 = vmul.f32 %v1341, %v1341
        %v1510 = vmul.f32 %v1342, %v1342
        %v1511 = vmul.f32 %v1343, %v1343
        %v1512 = vmul.f32 %v1344, %v1344
        %v1513 = vsel %vm780, %v1505, 0.0
        %1514 = vadd.xlane.f32.xlu0 %v1513
        %v1515 = vpop.xlane.xlu0 %1514
        %v1516 = vsel %vm780, %v1506, 0.0
        %1517 = vadd.xlane.f32.xlu0 %v1516
        %v1518 = vpop.xlane.xlu0 %1517
        %v1519 = vsel %vm780, %v1507, 0.0
        %1520 = vadd.xlane.f32.xlu0 %v1519
        %v1521 = vpop.xlane.xlu0 %1520
        %v1522 = vsel %vm780, %v1508, 0.0
        %1523 = vadd.xlane.f32.xlu0 %v1522
        %v1524 = vpop.xlane.xlu0 %1523
        %v1525 = vsel %vm780, %v1509, 0.0
        %1526 = vadd.xlane.f32.xlu0 %v1525
        %v1527 = vpop.xlane.xlu0 %1526
        %v1528 = vsel %vm780, %v1510, 0.0
        %1529 = vadd.xlane.f32.xlu0 %v1528
        %v1530 = vpop.xlane.xlu0 %1529
        %v1531 = vsel %vm780, %v1511, 0.0
        %1532 = vadd.xlane.f32.xlu0 %v1531
        %v1533 = vpop.xlane.xlu0 %1532
        %v1534 = vsel %vm780, %v1512, 0.0
        %1535 = vadd.xlane.f32.xlu0 %v1534
        %v1536 = vpop.xlane.xlu0 %1535
        %v1537 = vrsqrt.pop %v1515
        %v1538 = vrsqrt.pop %v1518
        %v1539 = vrsqrt.pop %v1521
        %v1540 = vrsqrt.pop %v1524
        %v1541 = vrsqrt.pop %v1527
        %v1542 = vrsqrt.pop %v1530
        %v1543 = vrsqrt.pop %v1533
        %v1544 = vrsqrt.pop %v1536
        %v1545 = vmin.f32 %v1537, 1e+08
        %v1546 = vmin.f32 %v1538, 1e+08
        %v1547 = vmin.f32 %v1539, 1e+08
        %v1548 = vmin.f32 %v1540, 1e+08
        %v1549 = vmin.f32 %v1541, 1e+08
        %v1550 = vmin.f32 %v1542, 1e+08
        %v1551 = vmin.f32 %v1543, 1e+08
        %v1552 = vmin.f32 %v1544, 1e+08
        %v1553 = vmul.f32 %v1353, %v1353
        %v1554 = vmul.f32 %v1354, %v1354
        %v1555 = vmul.f32 %v1355, %v1355
        %v1556 = vmul.f32 %v1356, %v1356
        %v1557 = vmul.f32 %v1357, %v1357
        %v1558 = vmul.f32 %v1358, %v1358
        %v1559 = vmul.f32 %v1359, %v1359
        %v1560 = vmul.f32 %v1360, %v1360
        %v1561 = vsel %vm780, %v1553, 0.0
        %1562 = vadd.xlane.f32.xlu0 %v1561
        %v1563 = vpop.xlane.xlu0 %1562
        %v1564 = vsel %vm780, %v1554, 0.0
        %1565 = vadd.xlane.f32.xlu0 %v1564
        %v1566 = vpop.xlane.xlu0 %1565
        %v1567 = vsel %vm780, %v1555, 0.0
        %1568 = vadd.xlane.f32.xlu0 %v1567
        %v1569 = vpop.xlane.xlu0 %1568
        %v1570 = vsel %vm780, %v1556, 0.0
        %1571 = vadd.xlane.f32.xlu0 %v1570
        %v1572 = vpop.xlane.xlu0 %1571
        %v1573 = vsel %vm780, %v1557, 0.0
        %1574 = vadd.xlane.f32.xlu0 %v1573
        %v1575 = vpop.xlane.xlu0 %1574
        %v1576 = vsel %vm780, %v1558, 0.0
        %1577 = vadd.xlane.f32.xlu0 %v1576
        %v1578 = vpop.xlane.xlu0 %1577
        %v1579 = vsel %vm780, %v1559, 0.0
        %1580 = vadd.xlane.f32.xlu0 %v1579
        %v1581 = vpop.xlane.xlu0 %1580
        %v1582 = vsel %vm780, %v1560, 0.0
        %1583 = vadd.xlane.f32.xlu0 %v1582
        %v1584 = vpop.xlane.xlu0 %1583
        %v1585 = vrsqrt.pop %v1563
        %v1586 = vrsqrt.pop %v1566
        %v1587 = vrsqrt.pop %v1569
        %v1588 = vrsqrt.pop %v1572
        %v1589 = vrsqrt.pop %v1575
        %v1590 = vrsqrt.pop %v1578
        %v1591 = vrsqrt.pop %v1581
        %v1592 = vrsqrt.pop %v1584
        %v1593 = vmin.f32 %v1585, 1e+08
        %v1594 = vmin.f32 %v1586, 1e+08
        %v1595 = vmin.f32 %v1587, 1e+08
        %v1596 = vmin.f32 %v1588, 1e+08
        %v1597 = vmin.f32 %v1589, 1e+08
        %v1598 = vmin.f32 %v1590, 1e+08
        %v1599 = vmin.f32 %v1591, 1e+08
        %v1600 = vmin.f32 %v1592, 1e+08
        %v1601 = vmul.f32 %v1025, %v1337
        %v1602 = vmul.f32 %v1030, %v1338
        %v1603 = vmul.f32 %v1035, %v1339
        %v1604 = vmul.f32 %v1040, %v1340
        %v1605 = vmul.f32 %v1045, %v1341
        %v1606 = vmul.f32 %v1050, %v1342
        %v1607 = vmul.f32 %v1055, %v1343
        %v1608 = vmul.f32 %v1060, %v1344
        %v1609 = vsel %vm780, %v1601, 0.0
        %1610 = vadd.xlane.f32.xlu0 %v1609
        %v1611 = vpop.xlane.xlu0 %1610
        %v1612 = vsel %vm780, %v1602, 0.0
        %1613 = vadd.xlane.f32.xlu0 %v1612
        %v1614 = vpop.xlane.xlu0 %1613
        %v1615 = vsel %vm780, %v1603, 0.0
        %1616 = vadd.xlane.f32.xlu0 %v1615
        %v1617 = vpop.xlane.xlu0 %1616
        %v1618 = vsel %vm780, %v1604, 0.0
        %1619 = vadd.xlane.f32.xlu0 %v1618
        %v1620 = vpop.xlane.xlu0 %1619
        %v1621 = vsel %vm780, %v1605, 0.0
        %1622 = vadd.xlane.f32.xlu0 %v1621
        %v1623 = vpop.xlane.xlu0 %1622
        %v1624 = vsel %vm780, %v1606, 0.0
        %1625 = vadd.xlane.f32.xlu0 %v1624
        %v1626 = vpop.xlane.xlu0 %1625
        %v1627 = vsel %vm780, %v1607, 0.0
        %1628 = vadd.xlane.f32.xlu0 %v1627
        %v1629 = vpop.xlane.xlu0 %1628
        %v1630 = vsel %vm780, %v1608, 0.0
        %1631 = vadd.xlane.f32.xlu0 %v1630
        %v1632 = vpop.xlane.xlu0 %1631
        %v1633 = vmul.f32 %v1611, %v1401
        %v1634 = vmul.f32 %v1614, %v1402
        %v1635 = vmul.f32 %v1617, %v1403
        %v1636 = vmul.f32 %v1620, %v1404
        %v1637 = vmul.f32 %v1623, %v1405
        %v1638 = vmul.f32 %v1626, %v1406
        %v1639 = vmul.f32 %v1629, %v1407
        %v1640 = vmul.f32 %v1632, %v1408
        %v1641 = vmul.f32 %v1633, %v1545
        %v1642 = vmul.f32 %v1634, %v1546
        %v1643 = vmul.f32 %v1635, %v1547
        %v1644 = vmul.f32 %v1636, %v1548
        %v1645 = vmul.f32 %v1637, %v1549
        %v1646 = vmul.f32 %v1638, %v1550
        %v1647 = vmul.f32 %v1639, %v1551
        %v1648 = vmul.f32 %v1640, %v1552
        %v1649 = vmul.f32 %v1299, %v1345
        %v1650 = vmul.f32 %v1304, %v1346
        %v1651 = vmul.f32 %v1309, %v1347
        %v1652 = vmul.f32 %v1314, %v1348
        %v1653 = vmul.f32 %v1319, %v1349
        %v1654 = vmul.f32 %v1324, %v1350
        %v1655 = vmul.f32 %v1329, %v1351
        %v1656 = vmul.f32 %v1334, %v1352
        %v1657 = vsel %vm780, %v1649, 0.0
        %1658 = vadd.xlane.f32.xlu0 %v1657
        %v1659 = vpop.xlane.xlu0 %1658
        %v1660 = vsel %vm780, %v1650, 0.0
        %1661 = vadd.xlane.f32.xlu0 %v1660
        %v1662 = vpop.xlane.xlu0 %1661
        %v1663 = vsel %vm780, %v1651, 0.0
        %1664 = vadd.xlane.f32.xlu0 %v1663
        %v1665 = vpop.xlane.xlu0 %1664
        %v1666 = vsel %vm780, %v1652, 0.0
        %1667 = vadd.xlane.f32.xlu0 %v1666
        %v1668 = vpop.xlane.xlu0 %1667
        %v1669 = vsel %vm780, %v1653, 0.0
        %1670 = vadd.xlane.f32.xlu0 %v1669
        %v1671 = vpop.xlane.xlu0 %1670
        %v1672 = vsel %vm780, %v1654, 0.0
        %1673 = vadd.xlane.f32.xlu0 %v1672
        %v1674 = vpop.xlane.xlu0 %1673
        %v1675 = vsel %vm780, %v1655, 0.0
        %1676 = vadd.xlane.f32.xlu0 %v1675
        %v1677 = vpop.xlane.xlu0 %1676
        %v1678 = vsel %vm780, %v1656, 0.0
        %1679 = vadd.xlane.f32.xlu0 %v1678
        %v1680 = vpop.xlane.xlu0 %1679
        %v1681 = vmul.f32 %v1659, %v1449
        %v1682 = vmul.f32 %v1662, %v1450
        %v1683 = vmul.f32 %v1665, %v1451
        %v1684 = vmul.f32 %v1668, %v1452
        %v1685 = vmul.f32 %v1671, %v1453
        %v1686 = vmul.f32 %v1674, %v1454
        %v1687 = vmul.f32 %v1677, %v1455
        %v1688 = vmul.f32 %v1680, %v1456
        %v1689 = vmul.f32 %v1681, %v1497
        %v1690 = vmul.f32 %v1682, %v1498
        %v1691 = vmul.f32 %v1683, %v1499
        %v1692 = vmul.f32 %v1684, %v1500
        %v1693 = vmul.f32 %v1685, %v1501
        %v1694 = vmul.f32 %v1686, %v1502
        %v1695 = vmul.f32 %v1687, %v1503
        %v1696 = vmul.f32 %v1688, %v1504
        %v1697 = vadd.f32 %v1641, %v1689
        %v1698 = vadd.f32 %v1642, %v1690
        %v1699 = vadd.f32 %v1643, %v1691
        %v1700 = vadd.f32 %v1644, %v1692
        %v1701 = vadd.f32 %v1645, %v1693
        %v1702 = vadd.f32 %v1646, %v1694
        %v1703 = vadd.f32 %v1647, %v1695
        %v1704 = vadd.f32 %v1648, %v1696
        %v1705 = vsel %vm753, %v1697, 0.0
        %v1706 = vsel %vm754, %v1698, 0.0
        %v1707 = vsel %vm755, %v1699, 0.0
        %v1708 = vsel %vm756, %v1700, 0.0
        %v1709 = vsel %vm757, %v1701, 0.0
        %v1710 = vsel %vm758, %v1702, 0.0
        %v1711 = vsel %vm759, %v1703, 0.0
        %v1712 = vsel %vm760, %v1704, 0.0
        %v1713 = vmul.f32 %v1025, %v1353
        %v1714 = vmul.f32 %v1030, %v1354
        %v1715 = vmul.f32 %v1035, %v1355
        %v1716 = vmul.f32 %v1040, %v1356
        %v1717 = vmul.f32 %v1045, %v1357
        %v1718 = vmul.f32 %v1050, %v1358
        %v1719 = vmul.f32 %v1055, %v1359
        %v1720 = vmul.f32 %v1060, %v1360
        %v1721 = vsel %vm780, %v1713, 0.0
        %1722 = vadd.xlane.f32.xlu0 %v1721
        %v1723 = vpop.xlane.xlu0 %1722
        %v1724 = vsel %vm780, %v1714, 0.0
        %1725 = vadd.xlane.f32.xlu0 %v1724
        %v1726 = vpop.xlane.xlu0 %1725
        %v1727 = vsel %vm780, %v1715, 0.0
        %1728 = vadd.xlane.f32.xlu0 %v1727
        %v1729 = vpop.xlane.xlu0 %1728
        %v1730 = vsel %vm780, %v1716, 0.0
        %1731 = vadd.xlane.f32.xlu0 %v1730
        %v1732 = vpop.xlane.xlu0 %1731
        %v1733 = vsel %vm780, %v1717, 0.0
        %1734 = vadd.xlane.f32.xlu0 %v1733
        %v1735 = vpop.xlane.xlu0 %1734
        %v1736 = vsel %vm780, %v1718, 0.0
        %1737 = vadd.xlane.f32.xlu0 %v1736
        %v1738 = vpop.xlane.xlu0 %1737
        %v1739 = vsel %vm780, %v1719, 0.0
        %1740 = vadd.xlane.f32.xlu0 %v1739
        %v1741 = vpop.xlane.xlu0 %1740
        %v1742 = vsel %vm780, %v1720, 0.0
        %1743 = vadd.xlane.f32.xlu0 %v1742
        %v1744 = vpop.xlane.xlu0 %1743
        %v1745 = vmul.f32 %v1723, %v1401
        %v1746 = vmul.f32 %v1726, %v1402
        %v1747 = vmul.f32 %v1729, %v1403
        %v1748 = vmul.f32 %v1732, %v1404
        %v1749 = vmul.f32 %v1735, %v1405
        %v1750 = vmul.f32 %v1738, %v1406
        %v1751 = vmul.f32 %v1741, %v1407
        %v1752 = vmul.f32 %v1744, %v1408
        %v1753 = vmul.f32 %v1745, %v1593
        %v1754 = vmul.f32 %v1746, %v1594
        %v1755 = vmul.f32 %v1747, %v1595
        %v1756 = vmul.f32 %v1748, %v1596
        %v1757 = vmul.f32 %v1749, %v1597
        %v1758 = vmul.f32 %v1750, %v1598
        %v1759 = vmul.f32 %v1751, %v1599
        %v1760 = vmul.f32 %v1752, %v1600
        %v1761 = vmul.f32 %v1299, %v1353
        %v1762 = vmul.f32 %v1304, %v1354
        %v1763 = vmul.f32 %v1309, %v1355
        %v1764 = vmul.f32 %v1314, %v1356
        %v1765 = vmul.f32 %v1319, %v1357
        %v1766 = vmul.f32 %v1324, %v1358
        %v1767 = vmul.f32 %v1329, %v1359
        %v1768 = vmul.f32 %v1334, %v1360
        %v1769 = vsel %vm780, %v1761, 0.0
        %1770 = vadd.xlane.f32.xlu0 %v1769
        %v1771 = vpop.xlane.xlu0 %1770
        %v1772 = vsel %vm780, %v1762, 0.0
        %1773 = vadd.xlane.f32.xlu0 %v1772
        %v1774 = vpop.xlane.xlu0 %1773
        %v1775 = vsel %vm780, %v1763, 0.0
        %1776 = vadd.xlane.f32.xlu0 %v1775
        %v1777 = vpop.xlane.xlu0 %1776
        %v1778 = vsel %vm780, %v1764, 0.0
        %1779 = vadd.xlane.f32.xlu0 %v1778
        %v1780 = vpop.xlane.xlu0 %1779
        %v1781 = vsel %vm780, %v1765, 0.0
        %1782 = vadd.xlane.f32.xlu0 %v1781
        %v1783 = vpop.xlane.xlu0 %1782
        %v1784 = vsel %vm780, %v1766, 0.0
        %1785 = vadd.xlane.f32.xlu0 %v1784
        %v1786 = vpop.xlane.xlu0 %1785
        %v1787 = vsel %vm780, %v1767, 0.0
        %1788 = vadd.xlane.f32.xlu0 %v1787
        %v1789 = vpop.xlane.xlu0 %1788
        %v1790 = vsel %vm780, %v1768, 0.0
        %1791 = vadd.xlane.f32.xlu0 %v1790
        %v1792 = vpop.xlane.xlu0 %1791
        %v1793 = vmul.f32 %v1771, %v1449
        %v1794 = vmul.f32 %v1774, %v1450
        %v1795 = vmul.f32 %v1777, %v1451
        %v1796 = vmul.f32 %v1780, %v1452
        %v1797 = vmul.f32 %v1783, %v1453
        %v1798 = vmul.f32 %v1786, %v1454
        %v1799 = vmul.f32 %v1789, %v1455
        %v1800 = vmul.f32 %v1792, %v1456
        %v1801 = vmul.f32 %v1793, %v1593
        %v1802 = vmul.f32 %v1794, %v1594
        %v1803 = vmul.f32 %v1795, %v1595
        %v1804 = vmul.f32 %v1796, %v1596
        %v1805 = vmul.f32 %v1797, %v1597
        %v1806 = vmul.f32 %v1798, %v1598
        %v1807 = vmul.f32 %v1799, %v1599
        %v1808 = vmul.f32 %v1800, %v1600
        %v1809 = vadd.f32 %v1753, %v1801
        %v1810 = vadd.f32 %v1754, %v1802
        %v1811 = vadd.f32 %v1755, %v1803
        %v1812 = vadd.f32 %v1756, %v1804
        %v1813 = vadd.f32 %v1757, %v1805
        %v1814 = vadd.f32 %v1758, %v1806
        %v1815 = vadd.f32 %v1759, %v1807
        %v1816 = vadd.f32 %v1760, %v1808
        %v1817 = vsel %vm753, %v1809, 0.0
        %v1818 = vsel %vm754, %v1810, 0.0
        %v1819 = vsel %vm755, %v1811, 0.0
        %v1820 = vsel %vm756, %v1812, 0.0
        %v1821 = vsel %vm757, %v1813, 0.0
        %v1822 = vsel %vm758, %v1814, 0.0
        %v1823 = vsel %vm759, %v1815, 0.0
        %v1824 = vsel %vm760, %v1816, 0.0
        %v1825 = vld [vmem:[#allocation2] sm:$0xff]
        %v1826 = vld [vmem:[#allocation2 + $0x8] sm:$0xff]
        %v1827 = vld [vmem:[#allocation2 + $0x10] sm:$0xff]
        %v1828 = vld [vmem:[#allocation2 + $0x18] sm:$0xff]
        %v1829 = vld [vmem:[#allocation2 + $0x20] sm:$0xff]
        %v1830 = vld [vmem:[#allocation2 + $0x28] sm:$0xff]
        %v1831 = vld [vmem:[#allocation2 + $0x30] sm:$0xff]
        %v1832 = vld [vmem:[#allocation2 + $0x38] sm:$0xff]
        %v1833 = vadd.f32 %v1825, %v1705
        %v1834 = vadd.f32 %v1826, %v1706
        %v1835 = vadd.f32 %v1827, %v1707
        %v1836 = vadd.f32 %v1828, %v1708
        %v1837 = vadd.f32 %v1829, %v1709
        %v1838 = vadd.f32 %v1830, %v1710
        %v1839 = vadd.f32 %v1831, %v1711
        %v1840 = vadd.f32 %v1832, %v1712
        %vm1841 = vcmask 7168
        %1842 = vst.msk [vmem:[#allocation2] sm:$0xff] %vm1841, %v1833
        %1843 = vst.msk [vmem:[#allocation2 + $0x8] sm:$0xff] %vm1841, %v1834
        %1844 = vst.msk [vmem:[#allocation2 + $0x10] sm:$0xff] %vm1841, %v1835
        %1845 = vst.msk [vmem:[#allocation2 + $0x18] sm:$0xff] %vm1841, %v1836
        %1846 = vst.msk [vmem:[#allocation2 + $0x20] sm:$0xff] %vm1841, %v1837
        %1847 = vst.msk [vmem:[#allocation2 + $0x28] sm:$0xff] %vm1841, %v1838
        %1848 = vst.msk [vmem:[#allocation2 + $0x30] sm:$0xff] %vm1841, %v1839
        %1849 = vst.msk [vmem:[#allocation2 + $0x38] sm:$0xff] %vm1841, %v1840
        %v1850 = vld [vmem:[#allocation3] sm:$0xff]
        %v1851 = vld [vmem:[#allocation3 + $0x8] sm:$0xff]
        %v1852 = vld [vmem:[#allocation3 + $0x10] sm:$0xff]
        %v1853 = vld [vmem:[#allocation3 + $0x18] sm:$0xff]
        %v1854 = vld [vmem:[#allocation3 + $0x20] sm:$0xff]
        %v1855 = vld [vmem:[#allocation3 + $0x28] sm:$0xff]
        %v1856 = vld [vmem:[#allocation3 + $0x30] sm:$0xff]
        %v1857 = vld [vmem:[#allocation3 + $0x38] sm:$0xff]
        %v1858 = vadd.f32 %v1850, %v1817
        %v1859 = vadd.f32 %v1851, %v1818
        %v1860 = vadd.f32 %v1852, %v1819
        %v1861 = vadd.f32 %v1853, %v1820
        %v1862 = vadd.f32 %v1854, %v1821
        %v1863 = vadd.f32 %v1855, %v1822
        %v1864 = vadd.f32 %v1856, %v1823
        %v1865 = vadd.f32 %v1857, %v1824
        %1866 = vst.msk [vmem:[#allocation3] sm:$0xff] %vm1841, %v1858
        %1867 = vst.msk [vmem:[#allocation3 + $0x8] sm:$0xff] %vm1841, %v1859
        %1868 = vst.msk [vmem:[#allocation3 + $0x10] sm:$0xff] %vm1841, %v1860
        %1869 = vst.msk [vmem:[#allocation3 + $0x18] sm:$0xff] %vm1841, %v1861
        %1870 = vst.msk [vmem:[#allocation3 + $0x20] sm:$0xff] %vm1841, %v1862
        %1871 = vst.msk [vmem:[#allocation3 + $0x28] sm:$0xff] %vm1841, %v1863
        %1872 = vst.msk [vmem:[#allocation3 + $0x30] sm:$0xff] %vm1841, %v1864
        %1873 = vst.msk [vmem:[#allocation3 + $0x38] sm:$0xff] %vm1841, %v1865
        %p1874 = scmp.eq.s32.totalorder %s33, 1
        // Predicated region
        $region61: #{tpu_custom_call.1} parent=55 // pred_check
          %p1875 = pneg %p1874
        $region62: #{tpu_custom_call.1} parent=55 // pred_check_branch
          %1877 = sbr.rel (%p1875) target = $region64
        $region63: #{tpu_custom_call.1} parent=55 // pred_region
          %v1878 = vld [vmem:[#allocation2] sm:$0xff]
          %v1879 = vld [vmem:[#allocation2 + $0x8] sm:$0xff]
          %v1880 = vld [vmem:[#allocation2 + $0x10] sm:$0xff]
          %v1881 = vld [vmem:[#allocation2 + $0x18] sm:$0xff]
          %v1882 = vld [vmem:[#allocation2 + $0x20] sm:$0xff]
          %v1883 = vld [vmem:[#allocation2 + $0x28] sm:$0xff]
          %v1884 = vld [vmem:[#allocation2 + $0x30] sm:$0xff]
          %v1885 = vld [vmem:[#allocation2 + $0x38] sm:$0xff]
          %v1886 = vsel %vm1841, %v1878, 0.0
          %v1887 = vsel %vm1841, %v1879, 0.0
          %v1888 = vadd.f32 %v1886, %v1887
          %v1889 = vsel %vm1841, %v1880, 0.0
          %v1890 = vadd.f32 %v1888, %v1889
          %v1891 = vsel %vm1841, %v1881, 0.0
          %v1892 = vadd.f32 %v1890, %v1891
          %v1893 = vsel %vm1841, %v1882, 0.0
          %v1894 = vadd.f32 %v1892, %v1893
          %v1895 = vsel %vm1841, %v1883, 0.0
          %v1896 = vadd.f32 %v1894, %v1895
          %v1897 = vsel %vm1841, %v1884, 0.0
          %v1898 = vadd.f32 %v1896, %v1897
          %v1899 = vsel %vm1841, %v1885, 0.0
          %v1900 = vadd.f32 %v1898, %v1899
          %1901 = vadd.xlane.f32.xlu0 %v1900
          %v1902 = vpop.xlane.xlu0 %1901
          %v1903 = vrot.slane %v1902, 4
          %v1904 = vadd.f32 %v1902, %v1903
          %v1905 = vrot.slane %v1904, 2
          %v1906 = vadd.f32 %v1904, %v1905
          %v1907 = vrot.slane %v1906, 1
          %v1908 = vadd.f32 %v1906, %v1907
          %s1909 = vtos %v1908
          %v1910 = vstv %s1909
          %v1911 = vadd.f32 %v1910, 0.0
          %1912 = vst [vmem:[%s593] sm:$0xff] %v1911
          %v1913 = vld [vmem:[#allocation3] sm:$0xff]
          %v1914 = vld [vmem:[#allocation3 + $0x8] sm:$0xff]
          %v1915 = vld [vmem:[#allocation3 + $0x10] sm:$0xff]
          %v1916 = vld [vmem:[#allocation3 + $0x18] sm:$0xff]
          %v1917 = vld [vmem:[#allocation3 + $0x20] sm:$0xff]
          %v1918 = vld [vmem:[#allocation3 + $0x28] sm:$0xff]
          %v1919 = vld [vmem:[#allocation3 + $0x30] sm:$0xff]
          %v1920 = vld [vmem:[#allocation3 + $0x38] sm:$0xff]
          %v1921 = vsel %vm1841, %v1913, 0.0
          %v1922 = vsel %vm1841, %v1914, 0.0
          %v1923 = vadd.f32 %v1921, %v1922
          %v1924 = vsel %vm1841, %v1915, 0.0
          %v1925 = vadd.f32 %v1923, %v1924
          %v1926 = vsel %vm1841, %v1916, 0.0
          %v1927 = vadd.f32 %v1925, %v1926
          %v1928 = vsel %vm1841, %v1917, 0.0
          %v1929 = vadd.f32 %v1927, %v1928
          %v1930 = vsel %vm1841, %v1918, 0.0
          %v1931 = vadd.f32 %v1929, %v1930
          %v1932 = vsel %vm1841, %v1919, 0.0
          %v1933 = vadd.f32 %v1931, %v1932
          %v1934 = vsel %vm1841, %v1920, 0.0
          %v1935 = vadd.f32 %v1933, %v1934
          %1936 = vadd.xlane.f32.xlu0 %v1935
          %v1937 = vpop.xlane.xlu0 %1936
          %v1938 = vrot.slane %v1937, 4
          %v1939 = vadd.f32 %v1937, %v1938
          %v1940 = vrot.slane %v1939, 2
          %v1941 = vadd.f32 %v1939, %v1940
          %v1942 = vrot.slane %v1941, 1
          %v1943 = vadd.f32 %v1941, %v1942
          %s1944 = vtos %v1943
          %v1945 = vstv %s1944
          %v1946 = vadd.f32 %v1945, 0.0
          %1947 = vst [vmem:[%s600] sm:$0xff] %v1946
        $region64: #{tpu_custom_call.1} parent=55 // pred_fallthru
          _
        %s1948 = sand.u32 %s302, 1
        %s1949 = scalar_lea.sflag [#allocation5], %s1948
        %s1950 = sand.u32 %s302, 1
        %s1951 = smul.addr %s1950, 8
        %s1952 = scalar_lea.vmem [#allocation4], %s1951
        %s1953 = sand.u32 %s328, 1
        %s1954 = scalar_lea.sflag [#allocation7], %s1953
        %s1955 = sand.u32 %s328, 1
        %s1956 = smul.addr %s1955, 8
        %s1957 = scalar_lea.vmem [#allocation6], %s1956
        // Predicated region
        $region65: #{tpu_custom_call.1} parent=55 // pred_check
          %p1958 = pneg %p312
        $region66: #{tpu_custom_call.1} parent=55 // pred_check_branch
          %1960 = sbr.rel (%p1958) target = $region68
        $region67: #{tpu_custom_call.1} parent=55 // pred_region
          %s1962 = ssub.s32 128, 128
          %1963 = vsyncadd %s1949, %s1962
          %s1964 = smul.addr %s32, 128
          %s1965 = scalar_lea.hbm %s9, %s1964
          %s1967 = sshll.u32 %s1952, 4
          %s1968 = int_to_ptr.vmem [resolvable:$true] %s1967
          %1970 = dma.vmem_to_hbm [thread:$0]  %s1968, 128, %s1965, %s1949
        $region68: #{tpu_custom_call.1} parent=55 // pred_fallthru
          _
        // Predicated region
        $region69: #{tpu_custom_call.1} parent=55 // pred_check
          %p1971 = pneg %p338
        $region70: #{tpu_custom_call.1} parent=55 // pred_check_branch
          %1973 = sbr.rel (%p1971) target = $region72
        $region71: #{tpu_custom_call.1} parent=55 // pred_region
          %s1975 = ssub.s32 128, 128
          %1976 = vsyncadd %s1954, %s1975
          %s1977 = smul.addr %s32, 128
          %s1978 = scalar_lea.hbm %s10, %s1977
          %s1980 = sshll.u32 %s1957, 4
          %s1981 = int_to_ptr.vmem [resolvable:$true] %s1980
          %1983 = dma.vmem_to_hbm [thread:$0]  %s1981, 128, %s1978, %s1954
        $region72: #{tpu_custom_call.1} parent=55 // pred_fallthru
          _
      $region56: #{tpu_custom_call.1} parent=5 // pred_fallthru
        _
      %p1984 = scmp.le.s32.totalorder 2, %s23
      // Predicated region
      $region73: #{tpu_custom_call.1} parent=5 // pred_check
        %p1985 = pneg %p1984
      $region74: #{tpu_custom_call.1} parent=5 // pred_check_branch
        %1987 = sbr.rel (%p1985) target = $region76
      $region75: #{tpu_custom_call.1} parent=5 // pred_region
        %s1988 = ssub.s32 %s23, 2
        // Predicated region
        $region77: #{tpu_custom_call.1} parent=75 // pred_check
          %p1989 = pneg %p318
        $region78: #{tpu_custom_call.1} parent=75 // pred_check_branch
          %1991 = sbr.rel (%p1989) target = $region80
        $region79: #{tpu_custom_call.1} parent=75 // pred_region
          %s1992 = sand.u32 %s303, 1
          %s1993 = scalar_lea.sflag [#allocation5], %s1992
          %s1994 = sand.u32 %s303, 1
          %s1995 = smul.addr %s1994, 8
          %s1996 = scalar_lea.vmem [#allocation4], %s1995
          %1997 = dma.done %s1993, 128
        $region80: #{tpu_custom_call.1} parent=75 // pred_fallthru
          _
        // Predicated region
        $region81: #{tpu_custom_call.1} parent=75 // pred_check
          %p1998 = pneg %p344
        $region82: #{tpu_custom_call.1} parent=75 // pred_check_branch
          %2000 = sbr.rel (%p1998) target = $region84
        $region83: #{tpu_custom_call.1} parent=75 // pred_region
          %s2001 = sand.u32 %s329, 1
          %s2002 = scalar_lea.sflag [#allocation7], %s2001
          %s2003 = sand.u32 %s329, 1
          %s2004 = smul.addr %s2003, 8
          %s2005 = scalar_lea.vmem [#allocation6], %s2004
          %2006 = dma.done %s2002, 128
        $region84: #{tpu_custom_call.1} parent=75 // pred_fallthru
          _
      $region76: #{tpu_custom_call.1} parent=5 // pred_fallthru
        _
    $region6: #{tpu_custom_call.1} parent=1 // loop_footer
      %s27 = sadd.s32 1, %s23
    $region7: #{tpu_custom_call.1} parent=1 // loop_footer_branch
      %22 = sbr.rel target = $region3
    $region8: #{tpu_custom_call.1} parent=1 // loop_exit
      _
    %2007 = vsyncpa [#allocation5], 1
    %s2008 = scalar_lea.sflag [#allocation5], 1
    %2009 = vsyncpa %s2008, 1
    %2010 = vsyncpa [#allocation7], 1
    %s2011 = scalar_lea.sflag [#allocation7], 1
    %2012 = vsyncpa %s2011, 1

</llo_original>
